<compile_context>
chip_gen: v6e
topology: v6e:2x2x1
jax: 0.10.0
libtpu: 0.0.40
codegen_flags: <defaults>
</compile_context>

<pallas_src>
import jax
import jax.numpy as jnp
from jax import lax
from jax.experimental import pallas as pl
from jax.experimental.pallas import tpu as pltpu

HIDDEN_DIM = 32
EMBED_DIM = 16
VOCAB_SIZE = 50
VOCAB_PAD = 128          # one-hot lane width / MXU contraction dim
BATCH = 8
SEQ = 8
OUT_LANES = 128          # lane-dense combined output width


def _attentive_lstm_kernel(ids_ref, emb_ref, wih_ref, whh_ref, b_ref,
                           whead_ref, bhead_ref, out_ref):
    """Fused embedding + LSTM recurrence + linear head, fully VMEM-resident.

    ids_ref   : (S*B, 1)   int32 token ids, time-major (rows t*B:(t+1)*B = step t)
    emb_ref   : (VPAD, E)  embedding table, zero-padded past vocab_size
    wih_ref   : (E, 4H)    input->gate weights  (torch gate order i,f,g,o)
    whh_ref   : (H, 4H)    hidden->gate weights
    b_ref     : (1, 4H)    fused bias (b_ih + b_hh)
    whead_ref : (H, 128)   combined head: col 0 = w_out, cols 1..H = I_H, rest 0
    bhead_ref : (1, 128)   combined head bias: lane 0 = b_out, rest 0
    out_ref   : (B, 128)   lane 0 = logit, lanes 1..H = last hidden state
    """
    SB = ids_ref.shape[0]
    VPAD = emb_ref.shape[0]
    H = whh_ref.shape[0]
    B = out_ref.shape[0]
    S = SB // B

    # ---- Prologue (off the serial chain) --------------------------------
    # Fused embedding lookup + input projection.  Exact row selection:
    # onehot @ (table @ W_ih) picks table[id] @ W_ih.
    w_vg = jnp.dot(emb_ref[...], wih_ref[...],
                   preferred_element_type=jnp.float32)            # (VPAD, 4H)
    ids = ids_ref[...]                                            # (SB, 1) i32
    onehot = (ids == lax.broadcasted_iota(jnp.int32, (SB, VPAD), 1)
              ).astype(jnp.float32)                               # (SB, VPAD)
    pre = jnp.dot(onehot, w_vg,
                  preferred_element_type=jnp.float32) + b_ref[...]  # (SB, 4H)

    whh = whh_ref[...]                                            # (H, 4H)

    h = jnp.zeros((B, H), jnp.float32)
    c = jnp.zeros((B, H), jnp.float32)

    # ---- Fully unrolled recurrence: one MXU matmul per step on the chain.
    # `pre` slices are static and exactly one (8,128) vreg each.
    for t in range(S):
        gates = pre[t * B:(t + 1) * B, :] + jnp.dot(
            h, whh, preferred_element_type=jnp.float32)           # (B, 4H)
        # Two full-vreg EUP activations; 32-lane gate extraction afterwards.
        sig = jax.nn.sigmoid(gates)          # [i | f | . | o] groups valid
        tnh = jnp.tanh(gates)                # [. | . | g | .] group valid
        i_g = sig[:, 0 * H:1 * H]
        f_g = sig[:, 1 * H:2 * H]
        g_g = tnh[:, 2 * H:3 * H]
        o_g = sig[:, 3 * H:4 * H]
        c = f_g * c + i_g * g_g
        h = o_g * jnp.tanh(c)

    # ---- Epilogue: single lane-dense (B,128) store.
    # h @ [w_out | I | 0] = [logit | h | 0]; the identity block is an exact
    # copy of h through the MXU.
    out_ref[...] = jnp.dot(h, whead_ref[...],
                           preferred_element_type=jnp.float32) + bhead_ref[...]


def attentive_lstm_forward(x_ids, attention_mask, params):
    del attention_mask  # only consumed by the (external) attention module
    B, S = x_ids.shape
    H = params["w_hh"].shape[0]

    # Only remaining host-side glue: a 64-element int32 transpose to make the
    # ids time-major (rows t*B:(t+1)*B belong to timestep t).
    ids_tm = x_ids.T.reshape(S * B, 1).astype(jnp.int32)

    vmem = pl.BlockSpec(memory_space=pltpu.MemorySpace.VMEM)
    out = pl.pallas_call(
        _attentive_lstm_kernel,
        out_shape=jax.ShapeDtypeStruct((B, OUT_LANES), jnp.float32),
        in_specs=[vmem] * 7,
        out_specs=vmem,
    )(ids_tm,
      params["embedding_padded"],
      params["w_ih"],
      params["w_hh"],
      params["b"],
      params["w_head"],
      params["b_head"])

    logits = out[:, 0]                                 # out.squeeze(1)
    h_last = out[:, 1:1 + H]                           # final hidden state
    attn_weights = jnp.full((B, S), 1.0 / S, dtype=jnp.float32)
    return logits, attn_weights, h_last


def _jax_reference(x_ids, params):
    """Pure-JAX f32 reference (matches torch.nn.LSTM semantics)."""
    emb = params["embedding"][x_ids].astype(jnp.float32)
    B, S, _ = emb.shape
    H = params["w_hh"].shape[0]
    h = jnp.zeros((B, H), jnp.float32)
    c = jnp.zeros((B, H), jnp.float32)
    for t in range(S):
        gates = emb[:, t, :] @ params["w_ih"] + h @ params["w_hh"] + params["b"]
        i_g = jax.nn.sigmoid(gates[:, 0 * H:1 * H])
        f_g = jax.nn.sigmoid(gates[:, 1 * H:2 * H])
        g_g = jnp.tanh(gates[:, 2 * H:3 * H])
        o_g = jax.nn.sigmoid(gates[:, 3 * H:4 * H])
        c = f_g * c + i_g * g_g
        h = o_g * jnp.tanh(c)
    out = h @ params["w_out"] + params["b_out"]
    return out[:, 0], h


def init_params(key, hidden_dim, vocab_size, embed_dim):
    k = jax.random.split(key, 7)
    bound = 1.0 / jnp.sqrt(hidden_dim)
    emb = jax.random.normal(k[0], (vocab_size, embed_dim), jnp.float32)
    emb = emb.at[0].set(0.0)  # padding_idx=0
    w_ih = jax.random.uniform(k[1], (embed_dim, 4 * hidden_dim), jnp.float32, -bound, bound)
    w_hh = jax.random.uniform(k[2], (hidden_dim, 4 * hidden_dim), jnp.float32, -bound, bound)
    b_ih = jax.random.uniform(k[3], (4 * hidden_dim,), jnp.float32, -bound, bound)
    b_hh = jax.random.uniform(k[4], (4 * hidden_dim,), jnp.float32, -bound, bound)
    w_out = jax.random.uniform(k[5], (hidden_dim, 1), jnp.float32, -bound, bound)
    b_out = jax.random.uniform(k[6], (1,), jnp.float32, -bound, bound)

    # Derived, kernel-layout parameters (built ONCE at init so the per-call
    # wrapper adds no extra XLA ops).
    emb_pad = jnp.zeros((VOCAB_PAD, embed_dim), jnp.float32).at[:vocab_size].set(emb)
    w_head = jnp.zeros((hidden_dim, OUT_LANES), jnp.float32)
    w_head = w_head.at[:, 0:1].set(w_out)
    w_head = w_head.at[:, 1:1 + hidden_dim].set(jnp.eye(hidden_dim, dtype=jnp.float32))
    b_head = jnp.zeros((1, OUT_LANES), jnp.float32).at[0, 0].set(b_out[0])

    return {
        # raw (reference) parameters
        "embedding": emb,
        "w_ih": w_ih,
        "w_hh": w_hh,
        "b": (b_ih + b_hh).reshape(1, -1),   # torch applies b_ih + b_hh; fused
        "w_out": w_out,
        "b_out": b_out,
        # kernel-layout parameters
        "embedding_padded": emb_pad,
        "w_head": w_head,
        "b_head": b_head,
    }


if __name__ == "__main__":
    key = jax.random.PRNGKey(0)
    pkey, xkey = jax.random.split(key)
    params = init_params(pkey, HIDDEN_DIM, VOCAB_SIZE, EMBED_DIM)

    x_ids = jax.random.randint(xkey, (BATCH, SEQ), 0, VOCAB_SIZE, dtype=jnp.int32)
    attention_mask = (x_ids != 0).astype(jnp.float32)

    logits, attn_weights, h_last = attentive_lstm_forward(x_ids, attention_mask, params)
    logits = jax.block_until_ready(logits)
    attn_weights = jax.block_until_ready(attn_weights)
    h_last = jax.block_until_ready(h_last)

    ref_logits, ref_h = _jax_reference(x_ids, params)
    assert logits.shape == (BATCH,)
    assert attn_weights.shape == (BATCH, SEQ)
    assert jnp.allclose(logits, ref_logits, atol=1e-4, rtol=1e-4), "logits mismatch vs JAX reference"
    assert jnp.allclose(h_last, ref_h, atol=1e-4, rtol=1e-4), "hidden-state mismatch vs JAX reference"
    assert jnp.allclose(attn_weights, 1.0 / SEQ)
    print("KERNEL_OK")
</pallas_src>

<mosaic_0001>
module attributes {stable_mosaic.version = 11 : i64} {
  func.func @_attentive_lstm_kernel(%arg0: memref<64x1xi32, #tpu.memory_space<vmem>>, %arg1: memref<128x16xf32, #tpu.memory_space<vmem>>, %arg2: memref<16x128xf32, #tpu.memory_space<vmem>>, %arg3: memref<32x128xf32, #tpu.memory_space<vmem>>, %arg4: memref<1x128xf32, #tpu.memory_space<vmem>>, %arg5: memref<32x128xf32, #tpu.memory_space<vmem>>, %arg6: memref<1x128xf32, #tpu.memory_space<vmem>>, %arg7: memref<8x128xf32, #tpu.memory_space<vmem>>) attributes {dimension_semantics = [], scalar_prefetch = 0 : i64, scratch_operands = 0 : i64, tpu.core_type = #tpu.core_type<tc>} {
    %c0 = arith.constant 0 : index
    %c0_0 = arith.constant 0 : index
    %0 = vector.load %arg1[%c0, %c0_0] : memref<128x16xf32, #tpu.memory_space<vmem>>, vector<128x16xf32>
    %c0_1 = arith.constant 0 : index
    %c0_2 = arith.constant 0 : index
    %1 = vector.load %arg2[%c0_1, %c0_2] : memref<16x128xf32, #tpu.memory_space<vmem>>, vector<16x128xf32>
    %cst = arith.constant dense<0.000000e+00> : vector<128x128xf32>
    %2 = tpu.matmul %0, %1, %cst {dimension_numbers = #tpu.dot_dimension_numbers<[1], [0], [0], [1], [0, 0, 1, 1], [], []>} : vector<128x16xf32>, vector<16x128xf32>, vector<128x128xf32> -> vector<128x128xf32>
    %c0_3 = arith.constant 0 : index
    %c0_4 = arith.constant 0 : index
    %3 = vector.load %arg0[%c0_3, %c0_4] : memref<64x1xi32, #tpu.memory_space<vmem>>, vector<64x1xi32>
    %4 = tpu.iota {dimensions = array<i32: 1>} : vector<64x128xi32>
    %5 = vector.broadcast %3 : vector<64x1xi32> to vector<64x128xi32>
    %6 = arith.cmpi eq, %5, %4 : vector<64x128xi32>
    %7 = arith.extui %6 : vector<64x128xi1> to vector<64x128xi32>
    %8 = arith.sitofp %7 : vector<64x128xi32> to vector<64x128xf32>
    %cst_5 = arith.constant dense<0.000000e+00> : vector<64x128xf32>
    %9 = tpu.matmul %8, %2, %cst_5 {dimension_numbers = #tpu.dot_dimension_numbers<[1], [0], [0], [1], [0, 0, 1, 1], [], []>} : vector<64x128xf32>, vector<128x128xf32>, vector<64x128xf32> -> vector<64x128xf32>
    %c0_6 = arith.constant 0 : index
    %c0_7 = arith.constant 0 : index
    %10 = vector.load %arg4[%c0_6, %c0_7] : memref<1x128xf32, #tpu.memory_space<vmem>>, vector<1x128xf32>
    %11 = vector.broadcast %10 : vector<1x128xf32> to vector<64x128xf32>
    %12 = arith.addf %9, %11 : vector<64x128xf32>
    %c0_8 = arith.constant 0 : index
    %c0_9 = arith.constant 0 : index
    %13 = vector.load %arg3[%c0_8, %c0_9] : memref<32x128xf32, #tpu.memory_space<vmem>>, vector<32x128xf32>
    %cst_10 = arith.constant 0.000000e+00 : f32
    %14 = vector.broadcast %cst_10 : f32 to vector<8x32xf32>
    %cst_11 = arith.constant 0.000000e+00 : f32
    %15 = vector.broadcast %cst_11 : f32 to vector<8x32xf32>
    %16 = vector.extract_strided_slice %12 {offsets = [0, 0], sizes = [8, 128], strides = [1, 1]} : vector<64x128xf32> to vector<8x128xf32>
    %cst_12 = arith.constant dense<0.000000e+00> : vector<8x128xf32>
    %17 = tpu.matmul %14, %13, %cst_12 {dimension_numbers = #tpu.dot_dimension_numbers<[1], [0], [0], [1], [0, 0, 1, 1], [], []>} : vector<8x32xf32>, vector<32x128xf32>, vector<8x128xf32> -> vector<8x128xf32>
    %18 = arith.addf %16, %17 : vector<8x128xf32>
    %19 = arith.negf %18 : vector<8x128xf32>
    %20 = math.exp %19 : vector<8x128xf32>
    %cst_13 = arith.constant 1.000000e+00 : f32
    %21 = vector.broadcast %cst_13 : f32 to vector<8x128xf32>
    %22 = arith.addf %21, %20 : vector<8x128xf32>
    %23 = arith.divf %21, %22 : vector<8x128xf32>
    %24 = math.tanh %18 : vector<8x128xf32>
    %25 = vector.extract_strided_slice %23 {offsets = [0, 0], sizes = [8, 32], strides = [1, 1]} : vector<8x128xf32> to vector<8x32xf32>
    %26 = vector.extract_strided_slice %23 {offsets = [0, 32], sizes = [8, 32], strides = [1, 1]} : vector<8x128xf32> to vector<8x32xf32>
    %27 = vector.extract_strided_slice %24 {offsets = [0, 64], sizes = [8, 32], strides = [1, 1]} : vector<8x128xf32> to vector<8x32xf32>
    %28 = vector.extract_strided_slice %23 {offsets = [0, 96], sizes = [8, 32], strides = [1, 1]} : vector<8x128xf32> to vector<8x32xf32>
    %29 = arith.mulf %26, %15 : vector<8x32xf32>
    %30 = arith.mulf %25, %27 : vector<8x32xf32>
    %31 = arith.addf %29, %30 : vector<8x32xf32>
    %32 = math.tanh %31 : vector<8x32xf32>
    %33 = arith.mulf %28, %32 : vector<8x32xf32>
    %34 = vector.extract_strided_slice %12 {offsets = [8, 0], sizes = [8, 128], strides = [1, 1]} : vector<64x128xf32> to vector<8x128xf32>
    %cst_14 = arith.constant dense<0.000000e+00> : vector<8x128xf32>
    %35 = tpu.matmul %33, %13, %cst_14 {dimension_numbers = #tpu.dot_dimension_numbers<[1], [0], [0], [1], [0, 0, 1, 1], [], []>} : vector<8x32xf32>, vector<32x128xf32>, vector<8x128xf32> -> vector<8x128xf32>
    %36 = arith.addf %34, %35 : vector<8x128xf32>
    %37 = arith.negf %36 : vector<8x128xf32>
    %38 = math.exp %37 : vector<8x128xf32>
    %cst_15 = arith.constant 1.000000e+00 : f32
    %39 = vector.broadcast %cst_15 : f32 to vector<8x128xf32>
    %40 = arith.addf %39, %38 : vector<8x128xf32>
    %41 = arith.divf %39, %40 : vector<8x128xf32>
    %42 = math.tanh %36 : vector<8x128xf32>
    %43 = vector.extract_strided_slice %41 {offsets = [0, 0], sizes = [8, 32], strides = [1, 1]} : vector<8x128xf32> to vector<8x32xf32>
    %44 = vector.extract_strided_slice %41 {offsets = [0, 32], sizes = [8, 32], strides = [1, 1]} : vector<8x128xf32> to vector<8x32xf32>
    %45 = vector.extract_strided_slice %42 {offsets = [0, 64], sizes = [8, 32], strides = [1, 1]} : vector<8x128xf32> to vector<8x32xf32>
    %46 = vector.extract_strided_slice %41 {offsets = [0, 96], sizes = [8, 32], strides = [1, 1]} : vector<8x128xf32> to vector<8x32xf32>
    %47 = arith.mulf %44, %31 : vector<8x32xf32>
    %48 = arith.mulf %43, %45 : vector<8x32xf32>
    %49 = arith.addf %47, %48 : vector<8x32xf32>
    %50 = math.tanh %49 : vector<8x32xf32>
    %51 = arith.mulf %46, %50 : vector<8x32xf32>
    %52 = vector.extract_strided_slice %12 {offsets = [16, 0], sizes = [8, 128], strides = [1, 1]} : vector<64x128xf32> to vector<8x128xf32>
    %cst_16 = arith.constant dense<0.000000e+00> : vector<8x128xf32>
    %53 = tpu.matmul %51, %13, %cst_16 {dimension_numbers = #tpu.dot_dimension_numbers<[1], [0], [0], [1], [0, 0, 1, 1], [], []>} : vector<8x32xf32>, vector<32x128xf32>, vector<8x128xf32> -> vector<8x128xf32>
    %54 = arith.addf %52, %53 : vector<8x128xf32>
    %55 = arith.negf %54 : vector<8x128xf32>
    %56 = math.exp %55 : vector<8x128xf32>
    %cst_17 = arith.constant 1.000000e+00 : f32
    %57 = vector.broadcast %cst_17 : f32 to vector<8x128xf32>
    %58 = arith.addf %57, %56 : vector<8x128xf32>
    %59 = arith.divf %57, %58 : vector<8x128xf32>
    %60 = math.tanh %54 : vector<8x128xf32>
    %61 = vector.extract_strided_slice %59 {offsets = [0, 0], sizes = [8, 32], strides = [1, 1]} : vector<8x128xf32> to vector<8x32xf32>
    %62 = vector.extract_strided_slice %59 {offsets = [0, 32], sizes = [8, 32], strides = [1, 1]} : vector<8x128xf32> to vector<8x32xf32>
    %63 = vector.extract_strided_slice %60 {offsets = [0, 64], sizes = [8, 32], strides = [1, 1]} : vector<8x128xf32> to vector<8x32xf32>
    %64 = vector.extract_strided_slice %59 {offsets = [0, 96], sizes = [8, 32], strides = [1, 1]} : vector<8x128xf32> to vector<8x32xf32>
    %65 = arith.mulf %62, %49 : vector<8x32xf32>
    %66 = arith.mulf %61, %63 : vector<8x32xf32>
    %67 = arith.addf %65, %66 : vector<8x32xf32>
    %68 = math.tanh %67 : vector<8x32xf32>
    %69 = arith.mulf %64, %68 : vector<8x32xf32>
    %70 = vector.extract_strided_slice %12 {offsets = [24, 0], sizes = [8, 128], strides = [1, 1]} : vector<64x128xf32> to vector<8x128xf32>
    %cst_18 = arith.constant dense<0.000000e+00> : vector<8x128xf32>
    %71 = tpu.matmul %69, %13, %cst_18 {dimension_numbers = #tpu.dot_dimension_numbers<[1], [0], [0], [1], [0, 0, 1, 1], [], []>} : vector<8x32xf32>, vector<32x128xf32>, vector<8x128xf32> -> vector<8x128xf32>
    %72 = arith.addf %70, %71 : vector<8x128xf32>
    %73 = arith.negf %72 : vector<8x128xf32>
    %74 = math.exp %73 : vector<8x128xf32>
    %cst_19 = arith.constant 1.000000e+00 : f32
    %75 = vector.broadcast %cst_19 : f32 to vector<8x128xf32>
    %76 = arith.addf %75, %74 : vector<8x128xf32>
    %77 = arith.divf %75, %76 : vector<8x128xf32>
    %78 = math.tanh %72 : vector<8x128xf32>
    %79 = vector.extract_strided_slice %77 {offsets = [0, 0], sizes = [8, 32], strides = [1, 1]} : vector<8x128xf32> to vector<8x32xf32>
    %80 = vector.extract_strided_slice %77 {offsets = [0, 32], sizes = [8, 32], strides = [1, 1]} : vector<8x128xf32> to vector<8x32xf32>
    %81 = vector.extract_strided_slice %78 {offsets = [0, 64], sizes = [8, 32], strides = [1, 1]} : vector<8x128xf32> to vector<8x32xf32>
    %82 = vector.extract_strided_slice %77 {offsets = [0, 96], sizes = [8, 32], strides = [1, 1]} : vector<8x128xf32> to vector<8x32xf32>
    %83 = arith.mulf %80, %67 : vector<8x32xf32>
    %84 = arith.mulf %79, %81 : vector<8x32xf32>
    %85 = arith.addf %83, %84 : vector<8x32xf32>
    %86 = math.tanh %85 : vector<8x32xf32>
    %87 = arith.mulf %82, %86 : vector<8x32xf32>
    %88 = vector.extract_strided_slice %12 {offsets = [32, 0], sizes = [8, 128], strides = [1, 1]} : vector<64x128xf32> to vector<8x128xf32>
    %cst_20 = arith.constant dense<0.000000e+00> : vector<8x128xf32>
    %89 = tpu.matmul %87, %13, %cst_20 {dimension_numbers = #tpu.dot_dimension_numbers<[1], [0], [0], [1], [0, 0, 1, 1], [], []>} : vector<8x32xf32>, vector<32x128xf32>, vector<8x128xf32> -> vector<8x128xf32>
    %90 = arith.addf %88, %89 : vector<8x128xf32>
    %91 = arith.negf %90 : vector<8x128xf32>
    %92 = math.exp %91 : vector<8x128xf32>
    %cst_21 = arith.constant 1.000000e+00 : f32
    %93 = vector.broadcast %cst_21 : f32 to vector<8x128xf32>
    %94 = arith.addf %93, %92 : vector<8x128xf32>
    %95 = arith.divf %93, %94 : vector<8x128xf32>
    %96 = math.tanh %90 : vector<8x128xf32>
    %97 = vector.extract_strided_slice %95 {offsets = [0, 0], sizes = [8, 32], strides = [1, 1]} : vector<8x128xf32> to vector<8x32xf32>
    %98 = vector.extract_strided_slice %95 {offsets = [0, 32], sizes = [8, 32], strides = [1, 1]} : vector<8x128xf32> to vector<8x32xf32>
    %99 = vector.extract_strided_slice %96 {offsets = [0, 64], sizes = [8, 32], strides = [1, 1]} : vector<8x128xf32> to vector<8x32xf32>
    %100 = vector.extract_strided_slice %95 {offsets = [0, 96], sizes = [8, 32], strides = [1, 1]} : vector<8x128xf32> to vector<8x32xf32>
    %101 = arith.mulf %98, %85 : vector<8x32xf32>
    %102 = arith.mulf %97, %99 : vector<8x32xf32>
    %103 = arith.addf %101, %102 : vector<8x32xf32>
    %104 = math.tanh %103 : vector<8x32xf32>
    %105 = arith.mulf %100, %104 : vector<8x32xf32>
    %106 = vector.extract_strided_slice %12 {offsets = [40, 0], sizes = [8, 128], strides = [1, 1]} : vector<64x128xf32> to vector<8x128xf32>
    %cst_22 = arith.constant dense<0.000000e+00> : vector<8x128xf32>
    %107 = tpu.matmul %105, %13, %cst_22 {dimension_numbers = #tpu.dot_dimension_numbers<[1], [0], [0], [1], [0, 0, 1, 1], [], []>} : vector<8x32xf32>, vector<32x128xf32>, vector<8x128xf32> -> vector<8x128xf32>
    %108 = arith.addf %106, %107 : vector<8x128xf32>
    %109 = arith.negf %108 : vector<8x128xf32>
    %110 = math.exp %109 : vector<8x128xf32>
    %cst_23 = arith.constant 1.000000e+00 : f32
    %111 = vector.broadcast %cst_23 : f32 to vector<8x128xf32>
    %112 = arith.addf %111, %110 : vector<8x128xf32>
    %113 = arith.divf %111, %112 : vector<8x128xf32>
    %114 = math.tanh %108 : vector<8x128xf32>
    %115 = vector.extract_strided_slice %113 {offsets = [0, 0], sizes = [8, 32], strides = [1, 1]} : vector<8x128xf32> to vector<8x32xf32>
    %116 = vector.extract_strided_slice %113 {offsets = [0, 32], sizes = [8, 32], strides = [1, 1]} : vector<8x128xf32> to vector<8x32xf32>
    %117 = vector.extract_strided_slice %114 {offsets = [0, 64], sizes = [8, 32], strides = [1, 1]} : vector<8x128xf32> to vector<8x32xf32>
    %118 = vector.extract_strided_slice %113 {offsets = [0, 96], sizes = [8, 32], strides = [1, 1]} : vector<8x128xf32> to vector<8x32xf32>
    %119 = arith.mulf %116, %103 : vector<8x32xf32>
    %120 = arith.mulf %115, %117 : vector<8x32xf32>
    %121 = arith.addf %119, %120 : vector<8x32xf32>
    %122 = math.tanh %121 : vector<8x32xf32>
    %123 = arith.mulf %118, %122 : vector<8x32xf32>
    %124 = vector.extract_strided_slice %12 {offsets = [48, 0], sizes = [8, 128], strides = [1, 1]} : vector<64x128xf32> to vector<8x128xf32>
    %cst_24 = arith.constant dense<0.000000e+00> : vector<8x128xf32>
    %125 = tpu.matmul %123, %13, %cst_24 {dimension_numbers = #tpu.dot_dimension_numbers<[1], [0], [0], [1], [0, 0, 1, 1], [], []>} : vector<8x32xf32>, vector<32x128xf32>, vector<8x128xf32> -> vector<8x128xf32>
    %126 = arith.addf %124, %125 : vector<8x128xf32>
    %127 = arith.negf %126 : vector<8x128xf32>
    %128 = math.exp %127 : vector<8x128xf32>
    %cst_25 = arith.constant 1.000000e+00 : f32
    %129 = vector.broadcast %cst_25 : f32 to vector<8x128xf32>
    %130 = arith.addf %129, %128 : vector<8x128xf32>
    %131 = arith.divf %129, %130 : vector<8x128xf32>
    %132 = math.tanh %126 : vector<8x128xf32>
    %133 = vector.extract_strided_slice %131 {offsets = [0, 0], sizes = [8, 32], strides = [1, 1]} : vector<8x128xf32> to vector<8x32xf32>
    %134 = vector.extract_strided_slice %131 {offsets = [0, 32], sizes = [8, 32], strides = [1, 1]} : vector<8x128xf32> to vector<8x32xf32>
    %135 = vector.extract_strided_slice %132 {offsets = [0, 64], sizes = [8, 32], strides = [1, 1]} : vector<8x128xf32> to vector<8x32xf32>
    %136 = vector.extract_strided_slice %131 {offsets = [0, 96], sizes = [8, 32], strides = [1, 1]} : vector<8x128xf32> to vector<8x32xf32>
    %137 = arith.mulf %134, %121 : vector<8x32xf32>
    %138 = arith.mulf %133, %135 : vector<8x32xf32>
    %139 = arith.addf %137, %138 : vector<8x32xf32>
    %140 = math.tanh %139 : vector<8x32xf32>
    %141 = arith.mulf %136, %140 : vector<8x32xf32>
    %142 = vector.extract_strided_slice %12 {offsets = [56, 0], sizes = [8, 128], strides = [1, 1]} : vector<64x128xf32> to vector<8x128xf32>
    %cst_26 = arith.constant dense<0.000000e+00> : vector<8x128xf32>
    %143 = tpu.matmul %141, %13, %cst_26 {dimension_numbers = #tpu.dot_dimension_numbers<[1], [0], [0], [1], [0, 0, 1, 1], [], []>} : vector<8x32xf32>, vector<32x128xf32>, vector<8x128xf32> -> vector<8x128xf32>
    %144 = arith.addf %142, %143 : vector<8x128xf32>
    %145 = arith.negf %144 : vector<8x128xf32>
    %146 = math.exp %145 : vector<8x128xf32>
    %cst_27 = arith.constant 1.000000e+00 : f32
    %147 = vector.broadcast %cst_27 : f32 to vector<8x128xf32>
    %148 = arith.addf %147, %146 : vector<8x128xf32>
    %149 = arith.divf %147, %148 : vector<8x128xf32>
    %150 = math.tanh %144 : vector<8x128xf32>
    %151 = vector.extract_strided_slice %149 {offsets = [0, 0], sizes = [8, 32], strides = [1, 1]} : vector<8x128xf32> to vector<8x32xf32>
    %152 = vector.extract_strided_slice %149 {offsets = [0, 32], sizes = [8, 32], strides = [1, 1]} : vector<8x128xf32> to vector<8x32xf32>
    %153 = vector.extract_strided_slice %150 {offsets = [0, 64], sizes = [8, 32], strides = [1, 1]} : vector<8x128xf32> to vector<8x32xf32>
    %154 = vector.extract_strided_slice %149 {offsets = [0, 96], sizes = [8, 32], strides = [1, 1]} : vector<8x128xf32> to vector<8x32xf32>
    %155 = arith.mulf %152, %139 : vector<8x32xf32>
    %156 = arith.mulf %151, %153 : vector<8x32xf32>
    %157 = arith.addf %155, %156 : vector<8x32xf32>
    %158 = math.tanh %157 : vector<8x32xf32>
    %159 = arith.mulf %154, %158 : vector<8x32xf32>
    %c0_28 = arith.constant 0 : index
    %c0_29 = arith.constant 0 : index
    %160 = vector.load %arg5[%c0_28, %c0_29] : memref<32x128xf32, #tpu.memory_space<vmem>>, vector<32x128xf32>
    %cst_30 = arith.constant dense<0.000000e+00> : vector<8x128xf32>
    %161 = tpu.matmul %159, %160, %cst_30 {dimension_numbers = #tpu.dot_dimension_numbers<[1], [0], [0], [1], [0, 0, 1, 1], [], []>} : vector<8x32xf32>, vector<32x128xf32>, vector<8x128xf32> -> vector<8x128xf32>
    %c0_31 = arith.constant 0 : index
    %c0_32 = arith.constant 0 : index
    %162 = vector.load %arg6[%c0_31, %c0_32] : memref<1x128xf32, #tpu.memory_space<vmem>>, vector<1x128xf32>
    %163 = vector.broadcast %162 : vector<1x128xf32> to vector<8x128xf32>
    %164 = arith.addf %161, %163 : vector<8x128xf32>
    %c0_33 = arith.constant 0 : index
    %c0_34 = arith.constant 0 : index
    %165 = vector.load %arg7[%c0_33, %c0_34] : memref<8x128xf32, #tpu.memory_space<vmem>>, vector<8x128xf32>
    tpu.vector_store %arg7[%c0_33, %c0_34], %164 {strides = array<i32>} : memref<8x128xf32, #tpu.memory_space<vmem>>, vector<8x128xf32>,
    return
  }
}

</mosaic_0001>

<llo_original>
// kernel: tpu_custom_call.1
$region0: #{tpu_custom_call.1}
  #allocation0 [shape = 'u32[]', space=smem, size = 0x4, offset = 0x4, fixed_abs, tag = 'smem constant byte address 0x4 - core index']
  #allocation1 [shape = 'u32[144,128]{1,0:T(1,128)}', space=vmem, size = 0x12000, scoped, tag = 'internal scratch']
  %s0 = inlined_call_operand.vmem [shape: s32[64,1], index: 0, kind: input, shape index: {}]
  %s1 = inlined_call_operand.vmem [shape: f32[128,16], index: 1, kind: input, shape index: {}]
  %s2 = inlined_call_operand.vmem [shape: f32[16,128], index: 2, kind: input, shape index: {}]
  %s3 = inlined_call_operand.vmem [shape: f32[32,128], index: 3, kind: input, shape index: {}]
  %s4 = inlined_call_operand.vmem [shape: f32[1,128], index: 4, kind: input, shape index: {}]
  %s5 = inlined_call_operand.vmem [shape: f32[32,128], index: 5, kind: input, shape index: {}]
  %s6 = inlined_call_operand.vmem [shape: f32[1,128], index: 6, kind: input, shape index: {}]
  %s7 = inlined_call_operand.hbm [shape: f32[8,128], index: 7, kind: output, shape index: {}]
  %s8 = sld [smem:[#allocation0]]
  $region38: #{tpu_custom_call.1} parent=0
    _
  %s10 = ssub.s32 1, %s8
  %s11 = scalar_select 0, %s10, %s8
  $region1: #{tpu_custom_call.1} parent=0
    #allocation2 [shape = 'u8[4096]{0}', space=vmem, size = 0x1000, scoped, tag = 'output window, operand 0, single buffered']
    #allocation3 [shape = 's32[1]{0}', space=sflag, size = 0x4, scoped, tag = 'scoped memory for tpu_custom_call.1']
    %12 = vsyncpa [#allocation3], 0
    // Predicated region
    $region2: #{tpu_custom_call.1} parent=1 // pred_check
      _
    $region3: #{tpu_custom_call.1} parent=1 // pred_check_branch
      %14 = sbr.rel (0) target = $region5
    $region4: #{tpu_custom_call.1} parent=1 // pred_region
      _
    $region5: #{tpu_custom_call.1} parent=1 // pred_fallthru
      _
    // Predicated region
    $region6: #{tpu_custom_call.1} parent=1 // pred_check
      _
    $region7: #{tpu_custom_call.1} parent=1 // pred_check_branch
      %16 = sbr.rel (0) target = $region9
    $region8: #{tpu_custom_call.1} parent=1 // pred_region
      _
    $region9: #{tpu_custom_call.1} parent=1 // pred_fallthru
      _
    // Predicated region
    $region10: #{tpu_custom_call.1} parent=1 // pred_check
      _
    $region11: #{tpu_custom_call.1} parent=1 // pred_check_branch
      %18 = sbr.rel (0) target = $region13
    $region12: #{tpu_custom_call.1} parent=1 // pred_region
      _
    $region13: #{tpu_custom_call.1} parent=1 // pred_fallthru
      _
    // Predicated region
    $region14: #{tpu_custom_call.1} parent=1 // pred_check
      _
    $region15: #{tpu_custom_call.1} parent=1 // pred_check_branch
      %20 = sbr.rel (0) target = $region17
    $region16: #{tpu_custom_call.1} parent=1 // pred_region
      _
    $region17: #{tpu_custom_call.1} parent=1 // pred_fallthru
      _
    // Predicated region
    $region18: #{tpu_custom_call.1} parent=1 // pred_check
      _
    $region19: #{tpu_custom_call.1} parent=1 // pred_check_branch
      %22 = sbr.rel (0) target = $region21
    $region20: #{tpu_custom_call.1} parent=1 // pred_region
      _
    $region21: #{tpu_custom_call.1} parent=1 // pred_fallthru
      _
    // Predicated region
    $region22: #{tpu_custom_call.1} parent=1 // pred_check
      _
    $region23: #{tpu_custom_call.1} parent=1 // pred_check_branch
      %24 = sbr.rel (0) target = $region25
    $region24: #{tpu_custom_call.1} parent=1 // pred_region
      _
    $region25: #{tpu_custom_call.1} parent=1 // pred_fallthru
      _
    // Predicated region
    $region26: #{tpu_custom_call.1} parent=1 // pred_check
      _
    $region27: #{tpu_custom_call.1} parent=1 // pred_check_branch
      %26 = sbr.rel (0) target = $region29
    $region28: #{tpu_custom_call.1} parent=1 // pred_region
      _
    $region29: #{tpu_custom_call.1} parent=1 // pred_fallthru
      _
    %v27 = vld [vmem:[%s1] sm:$0xff]
    %v28 = vld [vmem:[%s1 + $0x8] sm:$0xff]
    %v29 = vld [vmem:[%s1 + $0x10] sm:$0xff]
    %v30 = vld [vmem:[%s1 + $0x18] sm:$0xff]
    %v31 = vld [vmem:[%s1 + $0x20] sm:$0xff]
    %v32 = vld [vmem:[%s1 + $0x28] sm:$0xff]
    %v33 = vld [vmem:[%s1 + $0x30] sm:$0xff]
    %v34 = vld [vmem:[%s1 + $0x38] sm:$0xff]
    %v35 = vld [vmem:[%s1 + $0x40] sm:$0xff]
    %v36 = vld [vmem:[%s1 + $0x48] sm:$0xff]
    %v37 = vld [vmem:[%s1 + $0x50] sm:$0xff]
    %v38 = vld [vmem:[%s1 + $0x58] sm:$0xff]
    %v39 = vld [vmem:[%s1 + $0x60] sm:$0xff]
    %v40 = vld [vmem:[%s1 + $0x68] sm:$0xff]
    %v41 = vld [vmem:[%s1 + $0x70] sm:$0xff]
    %v42 = vld [vmem:[%s1 + $0x78] sm:$0xff]
    %v43 = vld [vmem:[%s2] sm:$0xff]
    %v44 = vld [vmem:[%s2 + $0x8] sm:$0xff]
    %vm45 = vcmask 130048
    %v47 = vsel %vm45, %v27, 0
    %v50 = vsel %vm45, %v28, 0
    %v53 = vsel %vm45, %v29, 0
    %v56 = vsel %vm45, %v30, 0
    %v59 = vsel %vm45, %v31, 0
    %v62 = vsel %vm45, %v32, 0
    %v65 = vsel %vm45, %v33, 0
    %v68 = vsel %vm45, %v34, 0
    %v71 = vsel %vm45, %v35, 0
    %v74 = vsel %vm45, %v36, 0
    %v77 = vsel %vm45, %v37, 0
    %v80 = vsel %vm45, %v38, 0
    %v83 = vsel %vm45, %v39, 0
    %v86 = vsel %vm45, %v40, 0
    %v89 = vsel %vm45, %v41, 0
    %v92 = vsel %vm45, %v42, 0
    %94 = vmatprep.subr.mxu0 0.0
    %95 = vmatpush1.msra.mxu0 0.0
    %96 = vmatprep.subr.mxu0 0.0
    %97 = vmatpush1.msra.mxu0 0.0
    %98 = vmatprep.subr.mxu0 0.0
    %99 = vmatpush1.msra.mxu0 0.0
    %100 = vmatprep.subr.mxu0 0.0
    %101 = vmatpush1.msra.mxu0 0.0
    %102 = vmatprep.subr.mxu0 0.0
    %103 = vmatpush1.msra.mxu0 0.0
    %104 = vmatprep.subr.mxu0 0.0
    %105 = vmatpush1.msra.mxu0 0.0
    %106 = vmatprep.subr.mxu0 0.0
    %107 = vmatpush1.msra.mxu0 0.0
    %108 = vmatprep.subr.mxu0 0.0
    %109 = vmatpush1.msra.mxu0 0.0
    %110 = vmatprep.subr.mxu0 0.0
    %111 = vmatpush1.msra.mxu0 0.0
    %112 = vmatprep.subr.mxu0 0.0
    %113 = vmatpush1.msra.mxu0 0.0
    %114 = vmatprep.subr.mxu0 0.0
    %115 = vmatpush1.msra.mxu0 0.0
    %116 = vmatprep.subr.mxu0 0.0
    %117 = vmatpush1.msra.mxu0 0.0
    %118 = vmatprep.subr.mxu0 0.0
    %119 = vmatpush1.msra.mxu0 0.0
    %120 = vmatprep.subr.mxu0 0.0
    %121 = vmatpush1.msra.mxu0 0.0
    %122 = vmatprep.subr.mxu0 0.0
    %123 = vmatpush1.msra.mxu0 %v44
    %124 = vmatprep.subr.mxu0 0.0
    %125 = vmatpush1.msra.mxu0 %v43
    %126 = vmatprep.subr.mxu0 0.0
    %127 = vmatpush2.msra.mxu0 0.0
    %128 = vmatprep.subr.mxu0 0.0
    %129 = vmatpush2.msra.mxu0 0.0
    %130 = vmatprep.subr.mxu0 0.0
    %131 = vmatpush2.msra.mxu0 0.0
    %132 = vmatprep.subr.mxu0 0.0
    %133 = vmatpush2.msra.mxu0 0.0
    %134 = vmatprep.subr.mxu0 0.0
    %135 = vmatpush2.msra.mxu0 0.0
    %136 = vmatprep.subr.mxu0 0.0
    %137 = vmatpush2.msra.mxu0 0.0
    %138 = vmatprep.subr.mxu0 0.0
    %139 = vmatpush2.msra.mxu0 0.0
    %140 = vmatprep.subr.mxu0 0.0
    %141 = vmatpush2.msra.mxu0 0.0
    %142 = vmatprep.subr.mxu0 0.0
    %143 = vmatpush2.msra.mxu0 0.0
    %144 = vmatprep.subr.mxu0 0.0
    %145 = vmatpush2.msra.mxu0 0.0
    %146 = vmatprep.subr.mxu0 0.0
    %147 = vmatpush2.msra.mxu0 0.0
    %148 = vmatprep.subr.mxu0 0.0
    %149 = vmatpush2.msra.mxu0 0.0
    %150 = vmatprep.subr.mxu0 0.0
    %151 = vmatpush2.msra.mxu0 0.0
    %152 = vmatprep.subr.mxu0 0.0
    %153 = vmatpush2.msra.mxu0 0.0
    %154 = vmatprep.subr.mxu0 0.0
    %155 = vmatpush2.msra.mxu0 0.0
    %156 = vmatprep.subr.mxu0 0.0
    %157 = vmatpush2.msra.mxu0 0.0
    %158 = vmatprep.mubr.f32.mxu0 0.0
    %159 = vmatmul.mubr.f32.gmra.mxu0 %v47
    %v160 = vpop.f32.mrf.mxu0
    %v161 = vadd.f32 0.0, %v160
    %v162 = vpop.f32.mrf.mxu0
    %163 = vmatprep.mubr.f32.mxu0 0.0
    %164 = vmatmul.mubr.f32.gmra.mxu0 %v50
    %v165 = vpop.f32.mrf.mxu0
    %v166 = vadd.f32 0.0, %v165
    %v167 = vpop.f32.mrf.mxu0
    %168 = vmatprep.mubr.f32.mxu0 0.0
    %169 = vmatmul.mubr.f32.gmra.mxu0 %v53
    %v170 = vpop.f32.mrf.mxu0
    %v171 = vadd.f32 0.0, %v170
    %v172 = vpop.f32.mrf.mxu0
    %173 = vmatprep.mubr.f32.mxu0 0.0
    %174 = vmatmul.mubr.f32.gmra.mxu0 %v56
    %v175 = vpop.f32.mrf.mxu0
    %v176 = vadd.f32 0.0, %v175
    %v177 = vpop.f32.mrf.mxu0
    %178 = vmatprep.mubr.f32.mxu0 0.0
    %179 = vmatmul.mubr.f32.gmra.mxu0 %v59
    %v180 = vpop.f32.mrf.mxu0
    %v181 = vadd.f32 0.0, %v180
    %v182 = vpop.f32.mrf.mxu0
    %183 = vmatprep.mubr.f32.mxu0 0.0
    %184 = vmatmul.mubr.f32.gmra.mxu0 %v62
    %v185 = vpop.f32.mrf.mxu0
    %v186 = vadd.f32 0.0, %v185
    %v187 = vpop.f32.mrf.mxu0
    %188 = vmatprep.mubr.f32.mxu0 0.0
    %189 = vmatmul.mubr.f32.gmra.mxu0 %v65
    %v190 = vpop.f32.mrf.mxu0
    %v191 = vadd.f32 0.0, %v190
    %v192 = vpop.f32.mrf.mxu0
    %193 = vmatprep.mubr.f32.mxu0 0.0
    %194 = vmatmul.mubr.f32.gmra.mxu0 %v68
    %v195 = vpop.f32.mrf.mxu0
    %v196 = vadd.f32 0.0, %v195
    %v197 = vpop.f32.mrf.mxu0
    %198 = vmatprep.mubr.f32.mxu0 0.0
    %199 = vmatmul.mubr.f32.gmra.mxu0 %v71
    %v200 = vpop.f32.mrf.mxu0
    %v201 = vadd.f32 0.0, %v200
    %v202 = vpop.f32.mrf.mxu0
    %203 = vmatprep.mubr.f32.mxu0 0.0
    %204 = vmatmul.mubr.f32.gmra.mxu0 %v74
    %v205 = vpop.f32.mrf.mxu0
    %v206 = vadd.f32 0.0, %v205
    %v207 = vpop.f32.mrf.mxu0
    %208 = vmatprep.mubr.f32.mxu0 0.0
    %209 = vmatmul.mubr.f32.gmra.mxu0 %v77
    %v210 = vpop.f32.mrf.mxu0
    %v211 = vadd.f32 0.0, %v210
    %v212 = vpop.f32.mrf.mxu0
    %213 = vmatprep.mubr.f32.mxu0 0.0
    %214 = vmatmul.mubr.f32.gmra.mxu0 %v80
    %v215 = vpop.f32.mrf.mxu0
    %v216 = vadd.f32 0.0, %v215
    %v217 = vpop.f32.mrf.mxu0
    %218 = vmatprep.mubr.f32.mxu0 0.0
    %219 = vmatmul.mubr.f32.gmra.mxu0 %v83
    %v220 = vpop.f32.mrf.mxu0
    %v221 = vadd.f32 0.0, %v220
    %v222 = vpop.f32.mrf.mxu0
    %223 = vmatprep.mubr.f32.mxu0 0.0
    %224 = vmatmul.mubr.f32.gmra.mxu0 %v86
    %v225 = vpop.f32.mrf.mxu0
    %v226 = vadd.f32 0.0, %v225
    %v227 = vpop.f32.mrf.mxu0
    %228 = vmatprep.mubr.f32.mxu0 0.0
    %229 = vmatmul.mubr.f32.gmra.mxu0 %v89
    %v230 = vpop.f32.mrf.mxu0
    %v231 = vadd.f32 0.0, %v230
    %v232 = vpop.f32.mrf.mxu0
    %233 = vmatprep.mubr.f32.mxu0 0.0
    %234 = vmatmul.mubr.f32.gmra.mxu0 %v92
    %v235 = vpop.f32.mrf.mxu0
    %v236 = vadd.f32 0.0, %v235
    %v237 = vpop.f32.mrf.mxu0
    %238 = vdwg.mxu0
    %v239 = vld [vmem:[%s0] sm:$0xff]
    %v240 = vld [vmem:[%s0 + $0x8] sm:$0xff]
    %v241 = vld [vmem:[%s0 + $0x10] sm:$0xff]
    %v242 = vld [vmem:[%s0 + $0x18] sm:$0xff]
    %v243 = vld [vmem:[%s0 + $0x20] sm:$0xff]
    %v244 = vld [vmem:[%s0 + $0x28] sm:$0xff]
    %v245 = vld [vmem:[%s0 + $0x30] sm:$0xff]
    %v246 = vld [vmem:[%s0 + $0x38] sm:$0xff]
    %v247 = vlaneseq
    %v248 = vand.u32 %v247, 127
    %249 = vset.pattern.permute.xlu0 0
    %250 = vperm.xlu0 %249, %v239
    %v251 = vpop.permute.xlu0 %250
    %252 = vset.pattern.permute.xlu0 0
    %253 = vperm.xlu0 %252, %v240
    %v254 = vpop.permute.xlu0 %253
    %255 = vset.pattern.permute.xlu0 0
    %256 = vperm.xlu0 %255, %v241
    %v257 = vpop.permute.xlu0 %256
    %258 = vset.pattern.permute.xlu0 0
    %259 = vperm.xlu0 %258, %v242
    %v260 = vpop.permute.xlu0 %259
    %261 = vset.pattern.permute.xlu0 0
    %262 = vperm.xlu0 %261, %v243
    %v263 = vpop.permute.xlu0 %262
    %264 = vset.pattern.permute.xlu0 0
    %265 = vperm.xlu0 %264, %v244
    %v266 = vpop.permute.xlu0 %265
    %267 = vset.pattern.permute.xlu0 0
    %268 = vperm.xlu0 %267, %v245
    %v269 = vpop.permute.xlu0 %268
    %270 = vset.pattern.permute.xlu0 0
    %271 = vperm.xlu0 %270, %v246
    %v272 = vpop.permute.xlu0 %271
    %vm273 = vcmp.eq.s32.totalorder %v251, %v248
    %vm274 = vcmp.eq.s32.totalorder %v254, %v248
    %vm275 = vcmp.eq.s32.totalorder %v257, %v248
    %vm276 = vcmp.eq.s32.totalorder %v260, %v248
    %vm277 = vcmp.eq.s32.totalorder %v263, %v248
    %vm278 = vcmp.eq.s32.totalorder %v266, %v248
    %vm279 = vcmp.eq.s32.totalorder %v269, %v248
    %vm280 = vcmp.eq.s32.totalorder %v272, %v248
    %v281 = vsel %vm273, 1, 0
    %v282 = vsel %vm274, 1, 0
    %v283 = vsel %vm275, 1, 0
    %v284 = vsel %vm276, 1, 0
    %v285 = vsel %vm277, 1, 0
    %v286 = vsel %vm278, 1, 0
    %v287 = vsel %vm279, 1, 0
    %v288 = vsel %vm280, 1, 0
    %v289 = vcvt.s32.f32 %v281
    %v290 = vcvt.s32.f32 %v282
    %v291 = vcvt.s32.f32 %v283
    %v292 = vcvt.s32.f32 %v284
    %v293 = vcvt.s32.f32 %v285
    %v294 = vcvt.s32.f32 %v286
    %v295 = vcvt.s32.f32 %v287
    %v296 = vcvt.s32.f32 %v288
    %v297 = vld [vmem:[%s4] sm:$0x1]
    %v299 = vlaneseq
    %v300 = vshrl.u32 %v299, 7
    %v301 = vsub.s32 0, %v300
    %v302 = vrot.slane %v297, %v301
    %304 = vmatprep.subr.mxu0 0.0
    %305 = vmatpush1.msra.mxu0 %v236
    %306 = vmatprep.subr.mxu0 0.0
    %307 = vmatpush1.msra.mxu0 %v231
    %308 = vmatprep.subr.mxu0 0.0
    %309 = vmatpush1.msra.mxu0 %v226
    %310 = vmatprep.subr.mxu0 0.0
    %311 = vmatpush1.msra.mxu0 %v221
    %312 = vmatprep.subr.mxu0 0.0
    %313 = vmatpush1.msra.mxu0 %v216
    %314 = vmatprep.subr.mxu0 0.0
    %315 = vmatpush1.msra.mxu0 %v211
    %316 = vmatprep.subr.mxu0 0.0
    %317 = vmatpush1.msra.mxu0 %v206
    %318 = vmatprep.subr.mxu0 0.0
    %319 = vmatpush1.msra.mxu0 %v201
    %320 = vmatprep.subr.mxu0 0.0
    %321 = vmatpush1.msra.mxu0 %v196
    %322 = vmatprep.subr.mxu0 0.0
    %323 = vmatpush1.msra.mxu0 %v191
    %324 = vmatprep.subr.mxu0 0.0
    %325 = vmatpush1.msra.mxu0 %v186
    %326 = vmatprep.subr.mxu0 0.0
    %327 = vmatpush1.msra.mxu0 %v181
    %328 = vmatprep.subr.mxu0 0.0
    %329 = vmatpush1.msra.mxu0 %v176
    %330 = vmatprep.subr.mxu0 0.0
    %331 = vmatpush1.msra.mxu0 %v171
    %332 = vmatprep.subr.mxu0 0.0
    %333 = vmatpush1.msra.mxu0 %v166
    %334 = vmatprep.subr.mxu0 0.0
    %335 = vmatpush1.msra.mxu0 %v161
    %336 = vmatprep.subr.mxu0 0.0
    %337 = vmatpush2.msra.mxu0 0.0
    %338 = vmatprep.subr.mxu0 0.0
    %339 = vmatpush2.msra.mxu0 0.0
    %340 = vmatprep.subr.mxu0 0.0
    %341 = vmatpush2.msra.mxu0 0.0
    %342 = vmatprep.subr.mxu0 0.0
    %343 = vmatpush2.msra.mxu0 0.0
    %344 = vmatprep.subr.mxu0 0.0
    %345 = vmatpush2.msra.mxu0 0.0
    %346 = vmatprep.subr.mxu0 0.0
    %347 = vmatpush2.msra.mxu0 0.0
    %348 = vmatprep.subr.mxu0 0.0
    %349 = vmatpush2.msra.mxu0 0.0
    %350 = vmatprep.subr.mxu0 0.0
    %351 = vmatpush2.msra.mxu0 0.0
    %352 = vmatprep.subr.mxu0 0.0
    %353 = vmatpush2.msra.mxu0 0.0
    %354 = vmatprep.subr.mxu0 0.0
    %355 = vmatpush2.msra.mxu0 0.0
    %356 = vmatprep.subr.mxu0 0.0
    %357 = vmatpush2.msra.mxu0 0.0
    %358 = vmatprep.subr.mxu0 0.0
    %359 = vmatpush2.msra.mxu0 0.0
    %360 = vmatprep.subr.mxu0 0.0
    %361 = vmatpush2.msra.mxu0 0.0
    %362 = vmatprep.subr.mxu0 0.0
    %363 = vmatpush2.msra.mxu0 0.0
    %364 = vmatprep.subr.mxu0 0.0
    %365 = vmatpush2.msra.mxu0 0.0
    %366 = vmatprep.subr.mxu0 0.0
    %367 = vmatpush2.msra.mxu0 0.0
    %368 = vmatprep.mubr.f32.mxu0 0.0
    %369 = vmatmul.mubr.f32.gmra.mxu0 %v289
    %v370 = vpop.f32.mrf.mxu0
    %v371 = vadd.f32 %v302, %v370
    %v372 = vpop.f32.mrf.mxu0
    %373 = vmatprep.mubr.f32.mxu0 0.0
    %374 = vmatmul.mubr.f32.gmra.mxu0 %v290
    %v375 = vpop.f32.mrf.mxu0
    %v376 = vadd.f32 %v302, %v375
    %v377 = vpop.f32.mrf.mxu0
    %378 = vmatprep.mubr.f32.mxu0 0.0
    %379 = vmatmul.mubr.f32.gmra.mxu0 %v291
    %v380 = vpop.f32.mrf.mxu0
    %v381 = vadd.f32 %v302, %v380
    %v382 = vpop.f32.mrf.mxu0
    %383 = vmatprep.mubr.f32.mxu0 0.0
    %384 = vmatmul.mubr.f32.gmra.mxu0 %v292
    %v385 = vpop.f32.mrf.mxu0
    %v386 = vadd.f32 %v302, %v385
    %v387 = vpop.f32.mrf.mxu0
    %388 = vmatprep.mubr.f32.mxu0 0.0
    %389 = vmatmul.mubr.f32.gmra.mxu0 %v293
    %v390 = vpop.f32.mrf.mxu0
    %v391 = vadd.f32 %v302, %v390
    %v392 = vpop.f32.mrf.mxu0
    %393 = vmatprep.mubr.f32.mxu0 0.0
    %394 = vmatmul.mubr.f32.gmra.mxu0 %v294
    %v395 = vpop.f32.mrf.mxu0
    %v396 = vadd.f32 %v302, %v395
    %v397 = vpop.f32.mrf.mxu0
    %398 = vmatprep.mubr.f32.mxu0 0.0
    %399 = vmatmul.mubr.f32.gmra.mxu0 %v295
    %v400 = vpop.f32.mrf.mxu0
    %v401 = vadd.f32 %v302, %v400
    %v402 = vpop.f32.mrf.mxu0
    %403 = vmatprep.mubr.f32.mxu0 0.0
    %404 = vmatmul.mubr.f32.gmra.mxu0 %v296
    %v405 = vpop.f32.mrf.mxu0
    %v406 = vadd.f32 %v302, %v405
    %v407 = vpop.f32.mrf.mxu0
    %408 = vdwg.mxu0
    %v409 = vld [vmem:[%s3] sm:$0xff]
    %v410 = vld [vmem:[%s3 + $0x8] sm:$0xff]
    %v411 = vld [vmem:[%s3 + $0x10] sm:$0xff]
    %v412 = vld [vmem:[%s3 + $0x18] sm:$0xff]
    %vm413 = vcmask 261120
    %v415 = vsel %vm413, 0.0, 0
    %417 = vmatprep.subr.mxu0 0.0
    %418 = vmatpush1.msra.mxu0 0.0
    %419 = vmatprep.subr.mxu0 0.0
    %420 = vmatpush1.msra.mxu0 0.0
    %421 = vmatprep.subr.mxu0 0.0
    %422 = vmatpush1.msra.mxu0 0.0
    %423 = vmatprep.subr.mxu0 0.0
    %424 = vmatpush1.msra.mxu0 0.0
    %425 = vmatprep.subr.mxu0 0.0
    %426 = vmatpush1.msra.mxu0 0.0
    %427 = vmatprep.subr.mxu0 0.0
    %428 = vmatpush1.msra.mxu0 0.0
    %429 = vmatprep.subr.mxu0 0.0
    %430 = vmatpush1.msra.mxu0 0.0
    %431 = vmatprep.subr.mxu0 0.0
    %432 = vmatpush1.msra.mxu0 0.0
    %433 = vmatprep.subr.mxu0 0.0
    %434 = vmatpush1.msra.mxu0 0.0
    %435 = vmatprep.subr.mxu0 0.0
    %436 = vmatpush1.msra.mxu0 0.0
    %437 = vmatprep.subr.mxu0 0.0
    %438 = vmatpush1.msra.mxu0 0.0
    %439 = vmatprep.subr.mxu0 0.0
    %440 = vmatpush1.msra.mxu0 0.0
    %441 = vmatprep.subr.mxu0 0.0
    %442 = vmatpush1.msra.mxu0 %v412
    %443 = vmatprep.subr.mxu0 0.0
    %444 = vmatpush1.msra.mxu0 %v411
    %445 = vmatprep.subr.mxu0 0.0
    %446 = vmatpush1.msra.mxu0 %v410
    %447 = vmatprep.subr.mxu0 0.0
    %448 = vmatpush1.msra.mxu0 %v409
    %449 = vmatprep.subr.mxu0 0.0
    %450 = vmatpush2.msra.mxu0 0.0
    %451 = vmatprep.subr.mxu0 0.0
    %452 = vmatpush2.msra.mxu0 0.0
    %453 = vmatprep.subr.mxu0 0.0
    %454 = vmatpush2.msra.mxu0 0.0
    %455 = vmatprep.subr.mxu0 0.0
    %456 = vmatpush2.msra.mxu0 0.0
    %457 = vmatprep.subr.mxu0 0.0
    %458 = vmatpush2.msra.mxu0 0.0
    %459 = vmatprep.subr.mxu0 0.0
    %460 = vmatpush2.msra.mxu0 0.0
    %461 = vmatprep.subr.mxu0 0.0
    %462 = vmatpush2.msra.mxu0 0.0
    %463 = vmatprep.subr.mxu0 0.0
    %464 = vmatpush2.msra.mxu0 0.0
    %465 = vmatprep.subr.mxu0 0.0
    %466 = vmatpush2.msra.mxu0 0.0
    %467 = vmatprep.subr.mxu0 0.0
    %468 = vmatpush2.msra.mxu0 0.0
    %469 = vmatprep.subr.mxu0 0.0
    %470 = vmatpush2.msra.mxu0 0.0
    %471 = vmatprep.subr.mxu0 0.0
    %472 = vmatpush2.msra.mxu0 0.0
    %473 = vmatprep.subr.mxu0 0.0
    %474 = vmatpush2.msra.mxu0 0.0
    %475 = vmatprep.subr.mxu0 0.0
    %476 = vmatpush2.msra.mxu0 0.0
    %477 = vmatprep.subr.mxu0 0.0
    %478 = vmatpush2.msra.mxu0 0.0
    %479 = vmatprep.subr.mxu0 0.0
    %480 = vmatpush2.msra.mxu0 0.0
    %481 = vmatprep.mubr.f32.mxu0 0.0
    %482 = vmatmul.mubr.f32.gmra.mxu0 %v415
    %v483 = vpop.f32.mrf.mxu0
    %v484 = vadd.f32 0.0, %v483
    %v485 = vpop.f32.mrf.mxu0
    %486 = vdwg.mxu0
    %v487 = vadd.f32 %v371, %v484
    %v488 = vxor.u32 %v487, 2147483648
    %v489 = vmul.f32 %v488, 1.442695
    %v490 = vpow.pop %v489
    %v491 = vadd.f32 %v490, 1.0
    %v492 = vrcp.pop %v491
    %v493 = vmul.f32 1.0, %v492
    %v494 = vtanh.pop %v487
    %v495 = vmul.f32 %v493, 0.0
    %497 = vrot.lane.b32.xlu0 %v494, 64
    %v498 = vpop.permute.xlu0 %497
    %v500 = vmul.f32 %v493, %v498
    %502 = vrot.lane.b32.xlu0 %v500, 32
    %v503 = vpop.permute.xlu0 %502
    %v505 = vadd.f32 %v495, %v503
    %v506 = vtanh.pop %v505
    %508 = vrot.lane.b32.xlu0 %v506, 64
    %v509 = vpop.permute.xlu0 %508
    %v511 = vmul.f32 %v493, %v509
    %513 = vrot.lane.b32.xlu0 %v511, 32
    %v514 = vpop.permute.xlu0 %513
    %v515 = vsel %vm413, %v514, 0
    %517 = vmatprep.subr.mxu0 0.0
    %518 = vmatpush1.msra.mxu0 0.0
    %519 = vmatprep.subr.mxu0 0.0
    %520 = vmatpush1.msra.mxu0 0.0
    %521 = vmatprep.subr.mxu0 0.0
    %522 = vmatpush1.msra.mxu0 0.0
    %523 = vmatprep.subr.mxu0 0.0
    %524 = vmatpush1.msra.mxu0 0.0
    %525 = vmatprep.subr.mxu0 0.0
    %526 = vmatpush1.msra.mxu0 0.0
    %527 = vmatprep.subr.mxu0 0.0
    %528 = vmatpush1.msra.mxu0 0.0
    %529 = vmatprep.subr.mxu0 0.0
    %530 = vmatpush1.msra.mxu0 0.0
    %531 = vmatprep.subr.mxu0 0.0
    %532 = vmatpush1.msra.mxu0 0.0
    %533 = vmatprep.subr.mxu0 0.0
    %534 = vmatpush1.msra.mxu0 0.0
    %535 = vmatprep.subr.mxu0 0.0
    %536 = vmatpush1.msra.mxu0 0.0
    %537 = vmatprep.subr.mxu0 0.0
    %538 = vmatpush1.msra.mxu0 0.0
    %539 = vmatprep.subr.mxu0 0.0
    %540 = vmatpush1.msra.mxu0 0.0
    %541 = vmatprep.subr.mxu0 0.0
    %542 = vmatpush1.msra.mxu0 %v412
    %543 = vmatprep.subr.mxu0 0.0
    %544 = vmatpush1.msra.mxu0 %v411
    %545 = vmatprep.subr.mxu0 0.0
    %546 = vmatpush1.msra.mxu0 %v410
    %547 = vmatprep.subr.mxu0 0.0
    %548 = vmatpush1.msra.mxu0 %v409
    %549 = vmatprep.subr.mxu0 0.0
    %550 = vmatpush2.msra.mxu0 0.0
    %551 = vmatprep.subr.mxu0 0.0
    %552 = vmatpush2.msra.mxu0 0.0
    %553 = vmatprep.subr.mxu0 0.0
    %554 = vmatpush2.msra.mxu0 0.0
    %555 = vmatprep.subr.mxu0 0.0
    %556 = vmatpush2.msra.mxu0 0.0
    %557 = vmatprep.subr.mxu0 0.0
    %558 = vmatpush2.msra.mxu0 0.0
    %559 = vmatprep.subr.mxu0 0.0
    %560 = vmatpush2.msra.mxu0 0.0
    %561 = vmatprep.subr.mxu0 0.0
    %562 = vmatpush2.msra.mxu0 0.0
    %563 = vmatprep.subr.mxu0 0.0
    %564 = vmatpush2.msra.mxu0 0.0
    %565 = vmatprep.subr.mxu0 0.0
    %566 = vmatpush2.msra.mxu0 0.0
    %567 = vmatprep.subr.mxu0 0.0
    %568 = vmatpush2.msra.mxu0 0.0
    %569 = vmatprep.subr.mxu0 0.0
    %570 = vmatpush2.msra.mxu0 0.0
    %571 = vmatprep.subr.mxu0 0.0
    %572 = vmatpush2.msra.mxu0 0.0
    %573 = vmatprep.subr.mxu0 0.0
    %574 = vmatpush2.msra.mxu0 0.0
    %575 = vmatprep.subr.mxu0 0.0
    %576 = vmatpush2.msra.mxu0 0.0
    %577 = vmatprep.subr.mxu0 0.0
    %578 = vmatpush2.msra.mxu0 0.0
    %579 = vmatprep.subr.mxu0 0.0
    %580 = vmatpush2.msra.mxu0 0.0
    %581 = vmatprep.mubr.f32.mxu0 0.0
    %582 = vmatmul.mubr.f32.gmra.mxu0 %v515
    %v583 = vpop.f32.mrf.mxu0
    %v584 = vadd.f32 0.0, %v583
    %v585 = vpop.f32.mrf.mxu0
    %586 = vdwg.mxu0
    %v587 = vadd.f32 %v376, %v584
    %v588 = vxor.u32 %v587, 2147483648
    %v589 = vmul.f32 %v588, 1.442695
    %v590 = vpow.pop %v589
    %v591 = vadd.f32 %v590, 1.0
    %v592 = vrcp.pop %v591
    %v593 = vmul.f32 1.0, %v592
    %v594 = vtanh.pop %v587
    %v595 = vmul.f32 %v593, %v505
    %597 = vrot.lane.b32.xlu0 %v594, 64
    %v598 = vpop.permute.xlu0 %597
    %v600 = vmul.f32 %v593, %v598
    %602 = vrot.lane.b32.xlu0 %v600, 32
    %v603 = vpop.permute.xlu0 %602
    %v605 = vadd.f32 %v595, %v603
    %v606 = vtanh.pop %v605
    %608 = vrot.lane.b32.xlu0 %v606, 64
    %v609 = vpop.permute.xlu0 %608
    %v611 = vmul.f32 %v593, %v609
    %613 = vrot.lane.b32.xlu0 %v611, 32
    %v614 = vpop.permute.xlu0 %613
    %v615 = vsel %vm413, %v614, 0
    %617 = vmatprep.subr.mxu0 0.0
    %618 = vmatpush1.msra.mxu0 0.0
    %619 = vmatprep.subr.mxu0 0.0
    %620 = vmatpush1.msra.mxu0 0.0
    %621 = vmatprep.subr.mxu0 0.0
    %622 = vmatpush1.msra.mxu0 0.0
    %623 = vmatprep.subr.mxu0 0.0
    %624 = vmatpush1.msra.mxu0 0.0
    %625 = vmatprep.subr.mxu0 0.0
    %626 = vmatpush1.msra.mxu0 0.0
    %627 = vmatprep.subr.mxu0 0.0
    %628 = vmatpush1.msra.mxu0 0.0
    %629 = vmatprep.subr.mxu0 0.0
    %630 = vmatpush1.msra.mxu0 0.0
    %631 = vmatprep.subr.mxu0 0.0
    %632 = vmatpush1.msra.mxu0 0.0
    %633 = vmatprep.subr.mxu0 0.0
    %634 = vmatpush1.msra.mxu0 0.0
    %635 = vmatprep.subr.mxu0 0.0
    %636 = vmatpush1.msra.mxu0 0.0
    %637 = vmatprep.subr.mxu0 0.0
    %638 = vmatpush1.msra.mxu0 0.0
    %639 = vmatprep.subr.mxu0 0.0
    %640 = vmatpush1.msra.mxu0 0.0
    %641 = vmatprep.subr.mxu0 0.0
    %642 = vmatpush1.msra.mxu0 %v412
    %643 = vmatprep.subr.mxu0 0.0
    %644 = vmatpush1.msra.mxu0 %v411
    %645 = vmatprep.subr.mxu0 0.0
    %646 = vmatpush1.msra.mxu0 %v410
    %647 = vmatprep.subr.mxu0 0.0
    %648 = vmatpush1.msra.mxu0 %v409
    %649 = vmatprep.subr.mxu0 0.0
    %650 = vmatpush2.msra.mxu0 0.0
    %651 = vmatprep.subr.mxu0 0.0
    %652 = vmatpush2.msra.mxu0 0.0
    %653 = vmatprep.subr.mxu0 0.0
    %654 = vmatpush2.msra.mxu0 0.0
    %655 = vmatprep.subr.mxu0 0.0
    %656 = vmatpush2.msra.mxu0 0.0
    %657 = vmatprep.subr.mxu0 0.0
    %658 = vmatpush2.msra.mxu0 0.0
    %659 = vmatprep.subr.mxu0 0.0
    %660 = vmatpush2.msra.mxu0 0.0
    %661 = vmatprep.subr.mxu0 0.0
    %662 = vmatpush2.msra.mxu0 0.0
    %663 = vmatprep.subr.mxu0 0.0
    %664 = vmatpush2.msra.mxu0 0.0
    %665 = vmatprep.subr.mxu0 0.0
    %666 = vmatpush2.msra.mxu0 0.0
    %667 = vmatprep.subr.mxu0 0.0
    %668 = vmatpush2.msra.mxu0 0.0
    %669 = vmatprep.subr.mxu0 0.0
    %670 = vmatpush2.msra.mxu0 0.0
    %671 = vmatprep.subr.mxu0 0.0
    %672 = vmatpush2.msra.mxu0 0.0
    %673 = vmatprep.subr.mxu0 0.0
    %674 = vmatpush2.msra.mxu0 0.0
    %675 = vmatprep.subr.mxu0 0.0
    %676 = vmatpush2.msra.mxu0 0.0
    %677 = vmatprep.subr.mxu0 0.0
    %678 = vmatpush2.msra.mxu0 0.0
    %679 = vmatprep.subr.mxu0 0.0
    %680 = vmatpush2.msra.mxu0 0.0
    %681 = vmatprep.mubr.f32.mxu0 0.0
    %682 = vmatmul.mubr.f32.gmra.mxu0 %v615
    %v683 = vpop.f32.mrf.mxu0
    %v684 = vadd.f32 0.0, %v683
    %v685 = vpop.f32.mrf.mxu0
    %686 = vdwg.mxu0
    %v687 = vadd.f32 %v381, %v684
    %v688 = vxor.u32 %v687, 2147483648
    %v689 = vmul.f32 %v688, 1.442695
    %v690 = vpow.pop %v689
    %v691 = vadd.f32 %v690, 1.0
    %v692 = vrcp.pop %v691
    %v693 = vmul.f32 1.0, %v692
    %v694 = vtanh.pop %v687
    %v695 = vmul.f32 %v693, %v605
    %697 = vrot.lane.b32.xlu0 %v694, 64
    %v698 = vpop.permute.xlu0 %697
    %v700 = vmul.f32 %v693, %v698
    %702 = vrot.lane.b32.xlu0 %v700, 32
    %v703 = vpop.permute.xlu0 %702
    %v705 = vadd.f32 %v695, %v703
    %v706 = vtanh.pop %v705
    %708 = vrot.lane.b32.xlu0 %v706, 64
    %v709 = vpop.permute.xlu0 %708
    %v711 = vmul.f32 %v693, %v709
    %713 = vrot.lane.b32.xlu0 %v711, 32
    %v714 = vpop.permute.xlu0 %713
    %v715 = vsel %vm413, %v714, 0
    %717 = vmatprep.subr.mxu0 0.0
    %718 = vmatpush1.msra.mxu0 0.0
    %719 = vmatprep.subr.mxu0 0.0
    %720 = vmatpush1.msra.mxu0 0.0
    %721 = vmatprep.subr.mxu0 0.0
    %722 = vmatpush1.msra.mxu0 0.0
    %723 = vmatprep.subr.mxu0 0.0
    %724 = vmatpush1.msra.mxu0 0.0
    %725 = vmatprep.subr.mxu0 0.0
    %726 = vmatpush1.msra.mxu0 0.0
    %727 = vmatprep.subr.mxu0 0.0
    %728 = vmatpush1.msra.mxu0 0.0
    %729 = vmatprep.subr.mxu0 0.0
    %730 = vmatpush1.msra.mxu0 0.0
    %731 = vmatprep.subr.mxu0 0.0
    %732 = vmatpush1.msra.mxu0 0.0
    %733 = vmatprep.subr.mxu0 0.0
    %734 = vmatpush1.msra.mxu0 0.0
    %735 = vmatprep.subr.mxu0 0.0
    %736 = vmatpush1.msra.mxu0 0.0
    %737 = vmatprep.subr.mxu0 0.0
    %738 = vmatpush1.msra.mxu0 0.0
    %739 = vmatprep.subr.mxu0 0.0
    %740 = vmatpush1.msra.mxu0 0.0
    %741 = vmatprep.subr.mxu0 0.0
    %742 = vmatpush1.msra.mxu0 %v412
    %743 = vmatprep.subr.mxu0 0.0
    %744 = vmatpush1.msra.mxu0 %v411
    %745 = vmatprep.subr.mxu0 0.0
    %746 = vmatpush1.msra.mxu0 %v410
    %747 = vmatprep.subr.mxu0 0.0
    %748 = vmatpush1.msra.mxu0 %v409
    %749 = vmatprep.subr.mxu0 0.0
    %750 = vmatpush2.msra.mxu0 0.0
    %751 = vmatprep.subr.mxu0 0.0
    %752 = vmatpush2.msra.mxu0 0.0
    %753 = vmatprep.subr.mxu0 0.0
    %754 = vmatpush2.msra.mxu0 0.0
    %755 = vmatprep.subr.mxu0 0.0
    %756 = vmatpush2.msra.mxu0 0.0
    %757 = vmatprep.subr.mxu0 0.0
    %758 = vmatpush2.msra.mxu0 0.0
    %759 = vmatprep.subr.mxu0 0.0
    %760 = vmatpush2.msra.mxu0 0.0
    %761 = vmatprep.subr.mxu0 0.0
    %762 = vmatpush2.msra.mxu0 0.0
    %763 = vmatprep.subr.mxu0 0.0
    %764 = vmatpush2.msra.mxu0 0.0
    %765 = vmatprep.subr.mxu0 0.0
    %766 = vmatpush2.msra.mxu0 0.0
    %767 = vmatprep.subr.mxu0 0.0
    %768 = vmatpush2.msra.mxu0 0.0
    %769 = vmatprep.subr.mxu0 0.0
    %770 = vmatpush2.msra.mxu0 0.0
    %771 = vmatprep.subr.mxu0 0.0
    %772 = vmatpush2.msra.mxu0 0.0
    %773 = vmatprep.subr.mxu0 0.0
    %774 = vmatpush2.msra.mxu0 0.0
    %775 = vmatprep.subr.mxu0 0.0
    %776 = vmatpush2.msra.mxu0 0.0
    %777 = vmatprep.subr.mxu0 0.0
    %778 = vmatpush2.msra.mxu0 0.0
    %779 = vmatprep.subr.mxu0 0.0
    %780 = vmatpush2.msra.mxu0 0.0
    %781 = vmatprep.mubr.f32.mxu0 0.0
    %782 = vmatmul.mubr.f32.gmra.mxu0 %v715
    %v783 = vpop.f32.mrf.mxu0
    %v784 = vadd.f32 0.0, %v783
    %v785 = vpop.f32.mrf.mxu0
    %786 = vdwg.mxu0
    %v787 = vadd.f32 %v386, %v784
    %v788 = vxor.u32 %v787, 2147483648
    %v789 = vmul.f32 %v788, 1.442695
    %v790 = vpow.pop %v789
    %v791 = vadd.f32 %v790, 1.0
    %v792 = vrcp.pop %v791
    %v793 = vmul.f32 1.0, %v792
    %v794 = vtanh.pop %v787
    %v795 = vmul.f32 %v793, %v705
    %797 = vrot.lane.b32.xlu0 %v794, 64
    %v798 = vpop.permute.xlu0 %797
    %v800 = vmul.f32 %v793, %v798
    %802 = vrot.lane.b32.xlu0 %v800, 32
    %v803 = vpop.permute.xlu0 %802
    %v805 = vadd.f32 %v795, %v803
    %v806 = vtanh.pop %v805
    %808 = vrot.lane.b32.xlu0 %v806, 64
    %v809 = vpop.permute.xlu0 %808
    %v811 = vmul.f32 %v793, %v809
    %813 = vrot.lane.b32.xlu0 %v811, 32
    %v814 = vpop.permute.xlu0 %813
    %v815 = vsel %vm413, %v814, 0
    %817 = vmatprep.subr.mxu0 0.0
    %818 = vmatpush1.msra.mxu0 0.0
    %819 = vmatprep.subr.mxu0 0.0
    %820 = vmatpush1.msra.mxu0 0.0
    %821 = vmatprep.subr.mxu0 0.0
    %822 = vmatpush1.msra.mxu0 0.0
    %823 = vmatprep.subr.mxu0 0.0
    %824 = vmatpush1.msra.mxu0 0.0
    %825 = vmatprep.subr.mxu0 0.0
    %826 = vmatpush1.msra.mxu0 0.0
    %827 = vmatprep.subr.mxu0 0.0
    %828 = vmatpush1.msra.mxu0 0.0
    %829 = vmatprep.subr.mxu0 0.0
    %830 = vmatpush1.msra.mxu0 0.0
    %831 = vmatprep.subr.mxu0 0.0
    %832 = vmatpush1.msra.mxu0 0.0
    %833 = vmatprep.subr.mxu0 0.0
    %834 = vmatpush1.msra.mxu0 0.0
    %835 = vmatprep.subr.mxu0 0.0
    %836 = vmatpush1.msra.mxu0 0.0
    %837 = vmatprep.subr.mxu0 0.0
    %838 = vmatpush1.msra.mxu0 0.0
    %839 = vmatprep.subr.mxu0 0.0
    %840 = vmatpush1.msra.mxu0 0.0
    %841 = vmatprep.subr.mxu0 0.0
    %842 = vmatpush1.msra.mxu0 %v412
    %843 = vmatprep.subr.mxu0 0.0
    %844 = vmatpush1.msra.mxu0 %v411
    %845 = vmatprep.subr.mxu0 0.0
    %846 = vmatpush1.msra.mxu0 %v410
    %847 = vmatprep.subr.mxu0 0.0
    %848 = vmatpush1.msra.mxu0 %v409
    %849 = vmatprep.subr.mxu0 0.0
    %850 = vmatpush2.msra.mxu0 0.0
    %851 = vmatprep.subr.mxu0 0.0
    %852 = vmatpush2.msra.mxu0 0.0
    %853 = vmatprep.subr.mxu0 0.0
    %854 = vmatpush2.msra.mxu0 0.0
    %855 = vmatprep.subr.mxu0 0.0
    %856 = vmatpush2.msra.mxu0 0.0
    %857 = vmatprep.subr.mxu0 0.0
    %858 = vmatpush2.msra.mxu0 0.0
    %859 = vmatprep.subr.mxu0 0.0
    %860 = vmatpush2.msra.mxu0 0.0
    %861 = vmatprep.subr.mxu0 0.0
    %862 = vmatpush2.msra.mxu0 0.0
    %863 = vmatprep.subr.mxu0 0.0
    %864 = vmatpush2.msra.mxu0 0.0
    %865 = vmatprep.subr.mxu0 0.0
    %866 = vmatpush2.msra.mxu0 0.0
    %867 = vmatprep.subr.mxu0 0.0
    %868 = vmatpush2.msra.mxu0 0.0
    %869 = vmatprep.subr.mxu0 0.0
    %870 = vmatpush2.msra.mxu0 0.0
    %871 = vmatprep.subr.mxu0 0.0
    %872 = vmatpush2.msra.mxu0 0.0
    %873 = vmatprep.subr.mxu0 0.0
    %874 = vmatpush2.msra.mxu0 0.0
    %875 = vmatprep.subr.mxu0 0.0
    %876 = vmatpush2.msra.mxu0 0.0
    %877 = vmatprep.subr.mxu0 0.0
    %878 = vmatpush2.msra.mxu0 0.0
    %879 = vmatprep.subr.mxu0 0.0
    %880 = vmatpush2.msra.mxu0 0.0
    %881 = vmatprep.mubr.f32.mxu0 0.0
    %882 = vmatmul.mubr.f32.gmra.mxu0 %v815
    %v883 = vpop.f32.mrf.mxu0
    %v884 = vadd.f32 0.0, %v883
    %v885 = vpop.f32.mrf.mxu0
    %886 = vdwg.mxu0
    %v887 = vadd.f32 %v391, %v884
    %v888 = vxor.u32 %v887, 2147483648
    %v889 = vmul.f32 %v888, 1.442695
    %v890 = vpow.pop %v889
    %v891 = vadd.f32 %v890, 1.0
    %v892 = vrcp.pop %v891
    %v893 = vmul.f32 1.0, %v892
    %v894 = vtanh.pop %v887
    %v895 = vmul.f32 %v893, %v805
    %897 = vrot.lane.b32.xlu0 %v894, 64
    %v898 = vpop.permute.xlu0 %897
    %v900 = vmul.f32 %v893, %v898
    %902 = vrot.lane.b32.xlu0 %v900, 32
    %v903 = vpop.permute.xlu0 %902
    %v905 = vadd.f32 %v895, %v903
    %v906 = vtanh.pop %v905
    %908 = vrot.lane.b32.xlu0 %v906, 64
    %v909 = vpop.permute.xlu0 %908
    %v911 = vmul.f32 %v893, %v909
    %913 = vrot.lane.b32.xlu0 %v911, 32
    %v914 = vpop.permute.xlu0 %913
    %v915 = vsel %vm413, %v914, 0
    %917 = vmatprep.subr.mxu0 0.0
    %918 = vmatpush1.msra.mxu0 0.0
    %919 = vmatprep.subr.mxu0 0.0
    %920 = vmatpush1.msra.mxu0 0.0
    %921 = vmatprep.subr.mxu0 0.0
    %922 = vmatpush1.msra.mxu0 0.0
    %923 = vmatprep.subr.mxu0 0.0
    %924 = vmatpush1.msra.mxu0 0.0
    %925 = vmatprep.subr.mxu0 0.0
    %926 = vmatpush1.msra.mxu0 0.0
    %927 = vmatprep.subr.mxu0 0.0
    %928 = vmatpush1.msra.mxu0 0.0
    %929 = vmatprep.subr.mxu0 0.0
    %930 = vmatpush1.msra.mxu0 0.0
    %931 = vmatprep.subr.mxu0 0.0
    %932 = vmatpush1.msra.mxu0 0.0
    %933 = vmatprep.subr.mxu0 0.0
    %934 = vmatpush1.msra.mxu0 0.0
    %935 = vmatprep.subr.mxu0 0.0
    %936 = vmatpush1.msra.mxu0 0.0
    %937 = vmatprep.subr.mxu0 0.0
    %938 = vmatpush1.msra.mxu0 0.0
    %939 = vmatprep.subr.mxu0 0.0
    %940 = vmatpush1.msra.mxu0 0.0
    %941 = vmatprep.subr.mxu0 0.0
    %942 = vmatpush1.msra.mxu0 %v412
    %943 = vmatprep.subr.mxu0 0.0
    %944 = vmatpush1.msra.mxu0 %v411
    %945 = vmatprep.subr.mxu0 0.0
    %946 = vmatpush1.msra.mxu0 %v410
    %947 = vmatprep.subr.mxu0 0.0
    %948 = vmatpush1.msra.mxu0 %v409
    %949 = vmatprep.subr.mxu0 0.0
    %950 = vmatpush2.msra.mxu0 0.0
    %951 = vmatprep.subr.mxu0 0.0
    %952 = vmatpush2.msra.mxu0 0.0
    %953 = vmatprep.subr.mxu0 0.0
    %954 = vmatpush2.msra.mxu0 0.0
    %955 = vmatprep.subr.mxu0 0.0
    %956 = vmatpush2.msra.mxu0 0.0
    %957 = vmatprep.subr.mxu0 0.0
    %958 = vmatpush2.msra.mxu0 0.0
    %959 = vmatprep.subr.mxu0 0.0
    %960 = vmatpush2.msra.mxu0 0.0
    %961 = vmatprep.subr.mxu0 0.0
    %962 = vmatpush2.msra.mxu0 0.0
    %963 = vmatprep.subr.mxu0 0.0
    %964 = vmatpush2.msra.mxu0 0.0
    %965 = vmatprep.subr.mxu0 0.0
    %966 = vmatpush2.msra.mxu0 0.0
    %967 = vmatprep.subr.mxu0 0.0
    %968 = vmatpush2.msra.mxu0 0.0
    %969 = vmatprep.subr.mxu0 0.0
    %970 = vmatpush2.msra.mxu0 0.0
    %971 = vmatprep.subr.mxu0 0.0
    %972 = vmatpush2.msra.mxu0 0.0
    %973 = vmatprep.subr.mxu0 0.0
    %974 = vmatpush2.msra.mxu0 0.0
    %975 = vmatprep.subr.mxu0 0.0
    %976 = vmatpush2.msra.mxu0 0.0
    %977 = vmatprep.subr.mxu0 0.0
    %978 = vmatpush2.msra.mxu0 0.0
    %979 = vmatprep.subr.mxu0 0.0
    %980 = vmatpush2.msra.mxu0 0.0
    %981 = vmatprep.mubr.f32.mxu0 0.0
    %982 = vmatmul.mubr.f32.gmra.mxu0 %v915
    %v983 = vpop.f32.mrf.mxu0
    %v984 = vadd.f32 0.0, %v983
    %v985 = vpop.f32.mrf.mxu0
    %986 = vdwg.mxu0
    %v987 = vadd.f32 %v396, %v984
    %v988 = vxor.u32 %v987, 2147483648
    %v989 = vmul.f32 %v988, 1.442695
    %v990 = vpow.pop %v989
    %v991 = vadd.f32 %v990, 1.0
    %v992 = vrcp.pop %v991
    %v993 = vmul.f32 1.0, %v992
    %v994 = vtanh.pop %v987
    %v995 = vmul.f32 %v993, %v905
    %997 = vrot.lane.b32.xlu0 %v994, 64
    %v998 = vpop.permute.xlu0 %997
    %v1000 = vmul.f32 %v993, %v998
    %1002 = vrot.lane.b32.xlu0 %v1000, 32
    %v1003 = vpop.permute.xlu0 %1002
    %v1005 = vadd.f32 %v995, %v1003
    %v1006 = vtanh.pop %v1005
    %1008 = vrot.lane.b32.xlu0 %v1006, 64
    %v1009 = vpop.permute.xlu0 %1008
    %v1011 = vmul.f32 %v993, %v1009
    %1013 = vrot.lane.b32.xlu0 %v1011, 32
    %v1014 = vpop.permute.xlu0 %1013
    %v1015 = vsel %vm413, %v1014, 0
    %1017 = vmatprep.subr.mxu0 0.0
    %1018 = vmatpush1.msra.mxu0 0.0
    %1019 = vmatprep.subr.mxu0 0.0
    %1020 = vmatpush1.msra.mxu0 0.0
    %1021 = vmatprep.subr.mxu0 0.0
    %1022 = vmatpush1.msra.mxu0 0.0
    %1023 = vmatprep.subr.mxu0 0.0
    %1024 = vmatpush1.msra.mxu0 0.0
    %1025 = vmatprep.subr.mxu0 0.0
    %1026 = vmatpush1.msra.mxu0 0.0
    %1027 = vmatprep.subr.mxu0 0.0
    %1028 = vmatpush1.msra.mxu0 0.0
    %1029 = vmatprep.subr.mxu0 0.0
    %1030 = vmatpush1.msra.mxu0 0.0
    %1031 = vmatprep.subr.mxu0 0.0
    %1032 = vmatpush1.msra.mxu0 0.0
    %1033 = vmatprep.subr.mxu0 0.0
    %1034 = vmatpush1.msra.mxu0 0.0
    %1035 = vmatprep.subr.mxu0 0.0
    %1036 = vmatpush1.msra.mxu0 0.0
    %1037 = vmatprep.subr.mxu0 0.0
    %1038 = vmatpush1.msra.mxu0 0.0
    %1039 = vmatprep.subr.mxu0 0.0
    %1040 = vmatpush1.msra.mxu0 0.0
    %1041 = vmatprep.subr.mxu0 0.0
    %1042 = vmatpush1.msra.mxu0 %v412
    %1043 = vmatprep.subr.mxu0 0.0
    %1044 = vmatpush1.msra.mxu0 %v411
    %1045 = vmatprep.subr.mxu0 0.0
    %1046 = vmatpush1.msra.mxu0 %v410
    %1047 = vmatprep.subr.mxu0 0.0
    %1048 = vmatpush1.msra.mxu0 %v409
    %1049 = vmatprep.subr.mxu0 0.0
    %1050 = vmatpush2.msra.mxu0 0.0
    %1051 = vmatprep.subr.mxu0 0.0
    %1052 = vmatpush2.msra.mxu0 0.0
    %1053 = vmatprep.subr.mxu0 0.0
    %1054 = vmatpush2.msra.mxu0 0.0
    %1055 = vmatprep.subr.mxu0 0.0
    %1056 = vmatpush2.msra.mxu0 0.0
    %1057 = vmatprep.subr.mxu0 0.0
    %1058 = vmatpush2.msra.mxu0 0.0
    %1059 = vmatprep.subr.mxu0 0.0
    %1060 = vmatpush2.msra.mxu0 0.0
    %1061 = vmatprep.subr.mxu0 0.0
    %1062 = vmatpush2.msra.mxu0 0.0
    %1063 = vmatprep.subr.mxu0 0.0
    %1064 = vmatpush2.msra.mxu0 0.0
    %1065 = vmatprep.subr.mxu0 0.0
    %1066 = vmatpush2.msra.mxu0 0.0
    %1067 = vmatprep.subr.mxu0 0.0
    %1068 = vmatpush2.msra.mxu0 0.0
    %1069 = vmatprep.subr.mxu0 0.0
    %1070 = vmatpush2.msra.mxu0 0.0
    %1071 = vmatprep.subr.mxu0 0.0
    %1072 = vmatpush2.msra.mxu0 0.0
    %1073 = vmatprep.subr.mxu0 0.0
    %1074 = vmatpush2.msra.mxu0 0.0
    %1075 = vmatprep.subr.mxu0 0.0
    %1076 = vmatpush2.msra.mxu0 0.0
    %1077 = vmatprep.subr.mxu0 0.0
    %1078 = vmatpush2.msra.mxu0 0.0
    %1079 = vmatprep.subr.mxu0 0.0
    %1080 = vmatpush2.msra.mxu0 0.0
    %1081 = vmatprep.mubr.f32.mxu0 0.0
    %1082 = vmatmul.mubr.f32.gmra.mxu0 %v1015
    %v1083 = vpop.f32.mrf.mxu0
    %v1084 = vadd.f32 0.0, %v1083
    %v1085 = vpop.f32.mrf.mxu0
    %1086 = vdwg.mxu0
    %v1087 = vadd.f32 %v401, %v1084
    %v1088 = vxor.u32 %v1087, 2147483648
    %v1089 = vmul.f32 %v1088, 1.442695
    %v1090 = vpow.pop %v1089
    %v1091 = vadd.f32 %v1090, 1.0
    %v1092 = vrcp.pop %v1091
    %v1093 = vmul.f32 1.0, %v1092
    %v1094 = vtanh.pop %v1087
    %v1095 = vmul.f32 %v1093, %v1005
    %1097 = vrot.lane.b32.xlu0 %v1094, 64
    %v1098 = vpop.permute.xlu0 %1097
    %v1100 = vmul.f32 %v1093, %v1098
    %1102 = vrot.lane.b32.xlu0 %v1100, 32
    %v1103 = vpop.permute.xlu0 %1102
    %v1105 = vadd.f32 %v1095, %v1103
    %v1106 = vtanh.pop %v1105
    %1108 = vrot.lane.b32.xlu0 %v1106, 64
    %v1109 = vpop.permute.xlu0 %1108
    %v1111 = vmul.f32 %v1093, %v1109
    %1113 = vrot.lane.b32.xlu0 %v1111, 32
    %v1114 = vpop.permute.xlu0 %1113
    %v1115 = vsel %vm413, %v1114, 0
    %1117 = vmatprep.subr.mxu0 0.0
    %1118 = vmatpush1.msra.mxu0 0.0
    %1119 = vmatprep.subr.mxu0 0.0
    %1120 = vmatpush1.msra.mxu0 0.0
    %1121 = vmatprep.subr.mxu0 0.0
    %1122 = vmatpush1.msra.mxu0 0.0
    %1123 = vmatprep.subr.mxu0 0.0
    %1124 = vmatpush1.msra.mxu0 0.0
    %1125 = vmatprep.subr.mxu0 0.0
    %1126 = vmatpush1.msra.mxu0 0.0
    %1127 = vmatprep.subr.mxu0 0.0
    %1128 = vmatpush1.msra.mxu0 0.0
    %1129 = vmatprep.subr.mxu0 0.0
    %1130 = vmatpush1.msra.mxu0 0.0
    %1131 = vmatprep.subr.mxu0 0.0
    %1132 = vmatpush1.msra.mxu0 0.0
    %1133 = vmatprep.subr.mxu0 0.0
    %1134 = vmatpush1.msra.mxu0 0.0
    %1135 = vmatprep.subr.mxu0 0.0
    %1136 = vmatpush1.msra.mxu0 0.0
    %1137 = vmatprep.subr.mxu0 0.0
    %1138 = vmatpush1.msra.mxu0 0.0
    %1139 = vmatprep.subr.mxu0 0.0
    %1140 = vmatpush1.msra.mxu0 0.0
    %1141 = vmatprep.subr.mxu0 0.0
    %1142 = vmatpush1.msra.mxu0 %v412
    %1143 = vmatprep.subr.mxu0 0.0
    %1144 = vmatpush1.msra.mxu0 %v411
    %1145 = vmatprep.subr.mxu0 0.0
    %1146 = vmatpush1.msra.mxu0 %v410
    %1147 = vmatprep.subr.mxu0 0.0
    %1148 = vmatpush1.msra.mxu0 %v409
    %1149 = vmatprep.subr.mxu0 0.0
    %1150 = vmatpush2.msra.mxu0 0.0
    %1151 = vmatprep.subr.mxu0 0.0
    %1152 = vmatpush2.msra.mxu0 0.0
    %1153 = vmatprep.subr.mxu0 0.0
    %1154 = vmatpush2.msra.mxu0 0.0
    %1155 = vmatprep.subr.mxu0 0.0
    %1156 = vmatpush2.msra.mxu0 0.0
    %1157 = vmatprep.subr.mxu0 0.0
    %1158 = vmatpush2.msra.mxu0 0.0
    %1159 = vmatprep.subr.mxu0 0.0
    %1160 = vmatpush2.msra.mxu0 0.0
    %1161 = vmatprep.subr.mxu0 0.0
    %1162 = vmatpush2.msra.mxu0 0.0
    %1163 = vmatprep.subr.mxu0 0.0
    %1164 = vmatpush2.msra.mxu0 0.0
    %1165 = vmatprep.subr.mxu0 0.0
    %1166 = vmatpush2.msra.mxu0 0.0
    %1167 = vmatprep.subr.mxu0 0.0
    %1168 = vmatpush2.msra.mxu0 0.0
    %1169 = vmatprep.subr.mxu0 0.0
    %1170 = vmatpush2.msra.mxu0 0.0
    %1171 = vmatprep.subr.mxu0 0.0
    %1172 = vmatpush2.msra.mxu0 0.0
    %1173 = vmatprep.subr.mxu0 0.0
    %1174 = vmatpush2.msra.mxu0 0.0
    %1175 = vmatprep.subr.mxu0 0.0
    %1176 = vmatpush2.msra.mxu0 0.0
    %1177 = vmatprep.subr.mxu0 0.0
    %1178 = vmatpush2.msra.mxu0 0.0
    %1179 = vmatprep.subr.mxu0 0.0
    %1180 = vmatpush2.msra.mxu0 0.0
    %1181 = vmatprep.mubr.f32.mxu0 0.0
    %1182 = vmatmul.mubr.f32.gmra.mxu0 %v1115
    %v1183 = vpop.f32.mrf.mxu0
    %v1184 = vadd.f32 0.0, %v1183
    %v1185 = vpop.f32.mrf.mxu0
    %1186 = vdwg.mxu0
    %v1187 = vadd.f32 %v406, %v1184
    %v1188 = vxor.u32 %v1187, 2147483648
    %v1189 = vmul.f32 %v1188, 1.442695
    %v1190 = vpow.pop %v1189
    %v1191 = vadd.f32 %v1190, 1.0
    %v1192 = vrcp.pop %v1191
    %v1193 = vmul.f32 1.0, %v1192
    %v1194 = vtanh.pop %v1187
    %v1195 = vmul.f32 %v1193, %v1105
    %1197 = vrot.lane.b32.xlu0 %v1194, 64
    %v1198 = vpop.permute.xlu0 %1197
    %v1200 = vmul.f32 %v1193, %v1198
    %1202 = vrot.lane.b32.xlu0 %v1200, 32
    %v1203 = vpop.permute.xlu0 %1202
    %v1205 = vadd.f32 %v1195, %v1203
    %v1206 = vtanh.pop %v1205
    %1208 = vrot.lane.b32.xlu0 %v1206, 64
    %v1209 = vpop.permute.xlu0 %1208
    %v1211 = vmul.f32 %v1193, %v1209
    %v1212 = vld [vmem:[%s5] sm:$0xff]
    %v1213 = vld [vmem:[%s5 + $0x8] sm:$0xff]
    %v1214 = vld [vmem:[%s5 + $0x10] sm:$0xff]
    %v1215 = vld [vmem:[%s5 + $0x18] sm:$0xff]
    %v1216 = vld [vmem:[%s6] sm:$0x1]
    %v1218 = vlaneseq
    %v1219 = vshrl.u32 %v1218, 7
    %v1220 = vsub.s32 0, %v1219
    %v1221 = vrot.slane %v1216, %v1220
    %1224 = vrot.lane.b32.xlu0 %v1211, 32
    %v1225 = vpop.permute.xlu0 %1224
    %v1226 = vsel %vm413, %v1225, 0
    %1228 = vmatprep.subr.mxu0 0.0
    %1229 = vmatpush1.msra.mxu0 0.0
    %1230 = vmatprep.subr.mxu0 0.0
    %1231 = vmatpush1.msra.mxu0 0.0
    %1232 = vmatprep.subr.mxu0 0.0
    %1233 = vmatpush1.msra.mxu0 0.0
    %1234 = vmatprep.subr.mxu0 0.0
    %1235 = vmatpush1.msra.mxu0 0.0
    %1236 = vmatprep.subr.mxu0 0.0
    %1237 = vmatpush1.msra.mxu0 0.0
    %1238 = vmatprep.subr.mxu0 0.0
    %1239 = vmatpush1.msra.mxu0 0.0
    %1240 = vmatprep.subr.mxu0 0.0
    %1241 = vmatpush1.msra.mxu0 0.0
    %1242 = vmatprep.subr.mxu0 0.0
    %1243 = vmatpush1.msra.mxu0 0.0
    %1244 = vmatprep.subr.mxu0 0.0
    %1245 = vmatpush1.msra.mxu0 0.0
    %1246 = vmatprep.subr.mxu0 0.0
    %1247 = vmatpush1.msra.mxu0 0.0
    %1248 = vmatprep.subr.mxu0 0.0
    %1249 = vmatpush1.msra.mxu0 0.0
    %1250 = vmatprep.subr.mxu0 0.0
    %1251 = vmatpush1.msra.mxu0 0.0
    %1252 = vmatprep.subr.mxu0 0.0
    %1253 = vmatpush1.msra.mxu0 %v1215
    %1254 = vmatprep.subr.mxu0 0.0
    %1255 = vmatpush1.msra.mxu0 %v1214
    %1256 = vmatprep.subr.mxu0 0.0
    %1257 = vmatpush1.msra.mxu0 %v1213
    %1258 = vmatprep.subr.mxu0 0.0
    %1259 = vmatpush1.msra.mxu0 %v1212
    %1260 = vmatprep.subr.mxu0 0.0
    %1261 = vmatpush2.msra.mxu0 0.0
    %1262 = vmatprep.subr.mxu0 0.0
    %1263 = vmatpush2.msra.mxu0 0.0
    %1264 = vmatprep.subr.mxu0 0.0
    %1265 = vmatpush2.msra.mxu0 0.0
    %1266 = vmatprep.subr.mxu0 0.0
    %1267 = vmatpush2.msra.mxu0 0.0
    %1268 = vmatprep.subr.mxu0 0.0
    %1269 = vmatpush2.msra.mxu0 0.0
    %1270 = vmatprep.subr.mxu0 0.0
    %1271 = vmatpush2.msra.mxu0 0.0
    %1272 = vmatprep.subr.mxu0 0.0
    %1273 = vmatpush2.msra.mxu0 0.0
    %1274 = vmatprep.subr.mxu0 0.0
    %1275 = vmatpush2.msra.mxu0 0.0
    %1276 = vmatprep.subr.mxu0 0.0
    %1277 = vmatpush2.msra.mxu0 0.0
    %1278 = vmatprep.subr.mxu0 0.0
    %1279 = vmatpush2.msra.mxu0 0.0
    %1280 = vmatprep.subr.mxu0 0.0
    %1281 = vmatpush2.msra.mxu0 0.0
    %1282 = vmatprep.subr.mxu0 0.0
    %1283 = vmatpush2.msra.mxu0 0.0
    %1284 = vmatprep.subr.mxu0 0.0
    %1285 = vmatpush2.msra.mxu0 0.0
    %1286 = vmatprep.subr.mxu0 0.0
    %1287 = vmatpush2.msra.mxu0 0.0
    %1288 = vmatprep.subr.mxu0 0.0
    %1289 = vmatpush2.msra.mxu0 0.0
    %1290 = vmatprep.subr.mxu0 0.0
    %1291 = vmatpush2.msra.mxu0 0.0
    %1292 = vmatprep.mubr.f32.mxu0 0.0
    %1293 = vmatmul.mubr.f32.gmra.mxu0 %v1226
    %v1294 = vpop.f32.mrf.mxu0
    %v1295 = vadd.f32 %v1221, %v1294
    %v1296 = vpop.f32.mrf.mxu0
    %1297 = vdwg.mxu0
    %1298 = vst [vmem:[#allocation2] sm:$0xff] %v1295
    // Predicated region
    $region30: #{tpu_custom_call.1} parent=1 // pred_check
      _
    $region31: #{tpu_custom_call.1} parent=1 // pred_check_branch
      %1300 = sbr.rel (0) target = $region33
    $region32: #{tpu_custom_call.1} parent=1 // pred_region
      %s1302 = ssub.s32 128, 128
      %1303 = vsyncadd [#allocation3], %s1302
      %s1305 = sshll.u32 [#allocation2], 4
      %s1306 = int_to_ptr.vmem [resolvable:$true] %s1305
      %1308 = dma.vmem_to_hbm [thread:$0]  %s1306, 128, %s7, [#allocation3]
    $region33: #{tpu_custom_call.1} parent=1 // pred_fallthru
      _
    // Predicated region
    $region34: #{tpu_custom_call.1} parent=1 // pred_check
      _
    $region35: #{tpu_custom_call.1} parent=1 // pred_check_branch
      %1310 = sbr.rel (0) target = $region37
    $region36: #{tpu_custom_call.1} parent=1 // pred_region
      %1311 = dma.done [#allocation3], 128
    $region37: #{tpu_custom_call.1} parent=1 // pred_fallthru
      _
    %1312 = vsyncpa [#allocation3], 1

</llo_original>
